<compile_context>
chip_gen: v5e
topology: v5e:2x2
jax: 0.10.0
libtpu: 0.0.40
codegen_flags: <defaults>
</compile_context>

<pallas_src>
import math
import functools

import jax
import jax.numpy as jnp
from jax.experimental import pallas as pl
from jax.experimental.pallas import tpu as pltpu

D_HEAD = 64             # d_q = d_k = d_v in the PyTorch module
D_FFN = 2048            # FeedForwardNet hidden size
LN_EPS = 1e-5           # nn.LayerNorm default
NEG_MASK = -10000000.0  # matches torch masked_fill_(-1e7)

# One parallel grid axis, generous-but-safe scoped VMEM (works on v5e/v6e/v7x).
_CP_PARALLEL = pltpu.CompilerParams(
    dimension_semantics=("parallel",),
    vmem_limit_bytes=32 * 1024 * 1024,
)


def _pick_block_m(m, target=256):
    """Largest row-tile <= target that divides M (keeps VMEM bounded and
    enables software pipelining + dual-TC sharding)."""
    if m <= target:
        return m
    for bm in (target, 128, 64, 32, 16, 8):
        if m % bm == 0:
            return bm
    return m


# --------------------------------------------------------------------------
# Kernel: fused attention block for one batch element.
#   out = LayerNorm( causal_MHA(x) @ Wo + x ) * gamma + beta
# Heads are split by static in-kernel slices of the fused (S, 3*H*64) QKV
# activation (no host-side reshape/transpose, no HBM round-trip).
# TODO(synk): for long sequences switch to a flash-style online softmax with a
#             KV grid axis instead of materializing the full (S, S) score tile.
# --------------------------------------------------------------------------
def _attn_block_kernel(x_ref, wqkv_ref, wo_ref, g_ref, b_ref, o_ref,
                       *, num_heads, seq_len):
    hd = num_heads * D_HEAD
    scale = 1.0 / math.sqrt(D_HEAD)

    x = x_ref[0]                                   # (S, D) f32  (residual)
    xb = x.astype(jnp.bfloat16)

    # Fused Q|K|V projection: one MXU matmul, 3x wider N.
    qkv = jnp.dot(xb, wqkv_ref[...], preferred_element_type=jnp.float32)

    row = jax.lax.broadcasted_iota(jnp.int32, (seq_len, seq_len), 0)
    col = jax.lax.broadcasted_iota(jnp.int32, (seq_len, seq_len), 1)
    causal = col > row                             # triu(diagonal=1)

    outs = []
    for h in range(num_heads):                     # static unroll over heads
        q = qkv[:, h * D_HEAD:(h + 1) * D_HEAD].astype(jnp.bfloat16)
        k = qkv[:, hd + h * D_HEAD:hd + (h + 1) * D_HEAD].astype(jnp.bfloat16)
        v = qkv[:, 2 * hd + h * D_HEAD:2 * hd + (h + 1) * D_HEAD].astype(jnp.bfloat16)

        s = jax.lax.dot_general(q, k, (((1,), (1,)), ((), ())),
                                preferred_element_type=jnp.float32) * scale
        s = jnp.where(causal, jnp.float32(NEG_MASK), s)

        m = jnp.max(s, axis=-1, keepdims=True)
        e = jnp.exp(s - m)
        inv = pl.reciprocal(jnp.sum(e, axis=-1, keepdims=True), approx=True)
        p = (e * inv).astype(jnp.bfloat16)

        outs.append(jnp.dot(p, v, preferred_element_type=jnp.float32))

    attn = jnp.concatenate(outs, axis=-1).astype(jnp.bfloat16)   # (S, H*64)

    # W_O projection fused with residual add + LayerNorm epilogue.
    y = jnp.dot(attn, wo_ref[...], preferred_element_type=jnp.float32)
    z = y + x
    mean = jnp.mean(z, axis=-1, keepdims=True)
    var = jnp.mean(jnp.square(z - mean), axis=-1, keepdims=True)
    zn = (z - mean) * jax.lax.rsqrt(var + LN_EPS)
    o_ref[0] = zn * g_ref[...] + b_ref[...]


def attention_block(x, w_qkv, wo, gamma, beta, num_heads):
    b, s, d = x.shape
    n3 = w_qkv.shape[1]
    kernel = functools.partial(_attn_block_kernel,
                               num_heads=num_heads, seq_len=s)
    return pl.pallas_call(
        kernel,
        out_shape=jax.ShapeDtypeStruct((b, s, d), jnp.float32),
        grid=(b,),
        in_specs=[pl.BlockSpec((1, s, d), lambda i: (i, 0, 0)),
                  pl.BlockSpec((d, n3), lambda i: (0, 0)),
                  pl.BlockSpec((num_heads * D_HEAD, d), lambda i: (0, 0)),
                  pl.BlockSpec((1, d), lambda i: (0, 0)),
                  pl.BlockSpec((1, d), lambda i: (0, 0))],
        out_specs=pl.BlockSpec((1, s, d), lambda i: (i, 0, 0)),
        compiler_params=_CP_PARALLEL,
    )(x, w_qkv, wo, gamma, beta)


# --------------------------------------------------------------------------
# Kernel: feed-forward (Linear -> ReLU -> Linear) fused with residual + LN.
#   out = LayerNorm(relu(x @ w1) @ w2 + x) * gamma + beta
# Tiled over rows (batch*seq); weights stay resident across grid steps.
# --------------------------------------------------------------------------
def _ffn_add_ln_kernel(x_ref, w1_ref, w2_ref, g_ref, b_ref, o_ref):
    x = x_ref[...]                                        # f32 (bm, D)
    h = jnp.dot(x.astype(jnp.bfloat16), w1_ref[...],
                preferred_element_type=jnp.float32)
    h = jnp.maximum(h, 0.0)
    y = jnp.dot(h.astype(jnp.bfloat16), w2_ref[...],
                preferred_element_type=jnp.float32)
    z = y + x
    mean = jnp.mean(z, axis=-1, keepdims=True)
    var = jnp.mean(jnp.square(z - mean), axis=-1, keepdims=True)
    zn = (z - mean) * jax.lax.rsqrt(var + LN_EPS)
    o_ref[...] = zn * g_ref[...] + b_ref[...]


def ffn_add_layernorm(x, w1, w2, gamma, beta):
    m, d = x.shape
    bm = _pick_block_m(m)
    return pl.pallas_call(
        _ffn_add_ln_kernel,
        out_shape=jax.ShapeDtypeStruct((m, d), jnp.float32),
        grid=(m // bm,),
        in_specs=[pl.BlockSpec((bm, d), lambda i: (i, 0)),
                  pl.BlockSpec((d, D_FFN), lambda i: (0, 0)),
                  pl.BlockSpec((D_FFN, d), lambda i: (0, 0)),
                  pl.BlockSpec((1, d), lambda i: (0, 0)),
                  pl.BlockSpec((1, d), lambda i: (0, 0))],
        out_specs=pl.BlockSpec((bm, d), lambda i: (i, 0)),
        compiler_params=_CP_PARALLEL,
    )(x, w1, w2, gamma, beta)


# --------------------------------------------------------------------------
# Decoder layer forward (matches Decoder_layer.forward semantics).
# --------------------------------------------------------------------------
def decoder_layer(x, params, num_heads):
    b, s, d = x.shape

    # --- MultiHeadAttention + residual + LayerNorm (single fused kernel) ---
    x1 = attention_block(x, params["w_qkv"], params["wo"],
                         params["ln1_g"], params["ln1_b"], num_heads)

    # --- FeedForwardNet + residual + LayerNorm (fused, row-tiled) ---
    x2 = ffn_add_layernorm(x1.reshape(b * s, d),
                           params["w1"], params["w2"],
                           params["ln2_g"], params["ln2_b"])

    return x2.reshape(b, s, d)


def init_params(key, d_model, num_heads):
    ks = jax.random.split(key, 6)
    scale = 0.02
    hd = num_heads * D_HEAD
    wq = scale * jax.random.normal(ks[0], (d_model, hd), jnp.float32)
    wk = scale * jax.random.normal(ks[1], (d_model, hd), jnp.float32)
    wv = scale * jax.random.normal(ks[2], (d_model, hd), jnp.float32)
    return {
        # Fused Q|K|V weight, stored (in, out) i.e. torch weight transposed.
        "w_qkv": jnp.concatenate([wq, wk, wv], axis=1).astype(jnp.bfloat16),
        "wo": (scale * jax.random.normal(ks[3], (hd, d_model), jnp.float32)
               ).astype(jnp.bfloat16),
        "w1": (scale * jax.random.normal(ks[4], (d_model, D_FFN), jnp.float32)
               ).astype(jnp.bfloat16),
        "w2": (scale * jax.random.normal(ks[5], (D_FFN, d_model), jnp.float32)
               ).astype(jnp.bfloat16),
        # LayerNorm affine params (torch default init: weight=1, bias=0).
        "ln1_g": jnp.ones((1, d_model), jnp.float32),
        "ln1_b": jnp.zeros((1, d_model), jnp.float32),
        "ln2_g": jnp.ones((1, d_model), jnp.float32),
        "ln2_b": jnp.zeros((1, d_model), jnp.float32),
    }


if __name__ == "__main__":
    num_heads = 2
    d_model = 128
    batch = 2
    seq = 8

    key = jax.random.PRNGKey(0)
    k_x, k_p = jax.random.split(key)
    x = jax.random.normal(k_x, (batch, seq, d_model), jnp.float32)
    params = init_params(k_p, d_model, num_heads)

    fwd = jax.jit(functools.partial(decoder_layer, num_heads=num_heads))
    out = fwd(x, params)
    jax.block_until_ready(out)

    assert out.shape == (batch, seq, d_model)
    assert jnp.all(jnp.isfinite(out))
    print("KERNEL_OK")
</pallas_src>

<mosaic_0001>
module attributes {stable_mosaic.version = 11 : i64} {
  func.func @_ffn_add_ln_kernel(%arg0: i32, %arg1: memref<16x128xf32, #tpu.memory_space<vmem>>, %arg2: memref<128x2048xbf16, #tpu.memory_space<vmem>>, %arg3: memref<2048x128xbf16, #tpu.memory_space<vmem>>, %arg4: memref<1x128xf32, #tpu.memory_space<vmem>>, %arg5: memref<1x128xf32, #tpu.memory_space<vmem>>, %arg6: memref<16x128xf32, #tpu.memory_space<vmem>>) attributes {dimension_semantics = [#tpu.dimension_semantics<parallel>], iteration_bounds = array<i64: 1>, scalar_prefetch = 0 : i64, scratch_operands = 0 : i64, tpu.core_type = #tpu.core_type<tc>, window_params = [{transform_indices = @transform_0, window_bounds = array<i64: 16, 128>}, {pipeline_mode = #tpu.pipeline_mode<synchronous>, transform_indices = @transform_1, window_bounds = array<i64: 128, 2048>}, {pipeline_mode = #tpu.pipeline_mode<synchronous>, transform_indices = @transform_2, window_bounds = array<i64: 2048, 128>}, {pipeline_mode = #tpu.pipeline_mode<synchronous>, transform_indices = @transform_3, window_bounds = array<i64: 1, 128>}, {pipeline_mode = #tpu.pipeline_mode<synchronous>, transform_indices = @transform_4, window_bounds = array<i64: 1, 128>}, {transform_indices = @transform_5, window_bounds = array<i64: 16, 128>}]} {
    %c0 = arith.constant 0 : index
    %c0_0 = arith.constant 0 : index
    %0 = vector.load %arg1[%c0, %c0_0] : memref<16x128xf32, #tpu.memory_space<vmem>>, vector<16x128xf32>
    %1 = arith.truncf %0 : vector<16x128xf32> to vector<16x128xbf16>
    %c0_1 = arith.constant 0 : index
    %c0_2 = arith.constant 0 : index
    %2 = vector.load %arg2[%c0_1, %c0_2] : memref<128x2048xbf16, #tpu.memory_space<vmem>>, vector<128x2048xbf16>
    %cst = arith.constant dense<0.000000e+00> : vector<16x2048xf32>
    %3 = tpu.matmul %1, %2, %cst {dimension_numbers = #tpu.dot_dimension_numbers<[1], [0], [0], [1], [0, 0, 1, 1], [], []>} : vector<16x128xbf16>, vector<128x2048xbf16>, vector<16x2048xf32> -> vector<16x2048xf32>
    %cst_3 = arith.constant 0.000000e+00 : f32
    %4 = vector.broadcast %cst_3 : f32 to vector<16x2048xf32>
    %5 = arith.maximumf %3, %4 : vector<16x2048xf32>
    %6 = arith.truncf %5 : vector<16x2048xf32> to vector<16x2048xbf16>
    %c0_4 = arith.constant 0 : index
    %c0_5 = arith.constant 0 : index
    %7 = vector.load %arg3[%c0_4, %c0_5] : memref<2048x128xbf16, #tpu.memory_space<vmem>>, vector<2048x128xbf16>
    %cst_6 = arith.constant dense<0.000000e+00> : vector<16x128xf32>
    %8 = tpu.matmul %6, %7, %cst_6 {dimension_numbers = #tpu.dot_dimension_numbers<[1], [0], [0], [1], [0, 0, 1, 1], [], []>} : vector<16x2048xbf16>, vector<2048x128xbf16>, vector<16x128xf32> -> vector<16x128xf32>
    %9 = arith.addf %8, %0 : vector<16x128xf32>
    %cst_7 = arith.constant dense<0.000000e+00> : vector<16xf32>
    %10 = vector.multi_reduction <add>, %9, %cst_7 [1] : vector<16x128xf32> to vector<16xf32>
    %11 = vector.shape_cast %10 : vector<16xf32> to vector<16x1xf32>
    %cst_8 = arith.constant 1.280000e+02 : f32
    %12 = vector.broadcast %cst_8 : f32 to vector<16x1xf32>
    %13 = arith.divf %11, %12 : vector<16x1xf32>
    %14 = vector.broadcast %13 : vector<16x1xf32> to vector<16x128xf32>
    %15 = arith.subf %9, %14 : vector<16x128xf32>
    %16 = arith.mulf %15, %15 : vector<16x128xf32>
    %cst_9 = arith.constant dense<0.000000e+00> : vector<16xf32>
    %17 = vector.multi_reduction <add>, %16, %cst_9 [1] : vector<16x128xf32> to vector<16xf32>
    %18 = vector.shape_cast %17 : vector<16xf32> to vector<16x1xf32>
    %cst_10 = arith.constant 1.280000e+02 : f32
    %19 = vector.broadcast %cst_10 : f32 to vector<16x1xf32>
    %20 = arith.divf %18, %19 : vector<16x1xf32>
    %21 = vector.broadcast %13 : vector<16x1xf32> to vector<16x128xf32>
    %22 = arith.subf %9, %21 : vector<16x128xf32>
    %cst_11 = arith.constant 9.99999974E-6 : f32
    %23 = vector.broadcast %cst_11 : f32 to vector<16x1xf32>
    %24 = arith.addf %20, %23 : vector<16x1xf32>
    %25 = math.rsqrt %24 : vector<16x1xf32>
    %26 = vector.broadcast %25 : vector<16x1xf32> to vector<16x128xf32>
    %27 = arith.mulf %22, %26 : vector<16x128xf32>
    %c0_12 = arith.constant 0 : index
    %c0_13 = arith.constant 0 : index
    %28 = vector.load %arg4[%c0_12, %c0_13] : memref<1x128xf32, #tpu.memory_space<vmem>>, vector<1x128xf32>
    %29 = vector.broadcast %28 : vector<1x128xf32> to vector<16x128xf32>
    %30 = arith.mulf %27, %29 : vector<16x128xf32>
    %c0_14 = arith.constant 0 : index
    %c0_15 = arith.constant 0 : index
    %31 = vector.load %arg5[%c0_14, %c0_15] : memref<1x128xf32, #tpu.memory_space<vmem>>, vector<1x128xf32>
    %32 = vector.broadcast %31 : vector<1x128xf32> to vector<16x128xf32>
    %33 = arith.addf %30, %32 : vector<16x128xf32>
    %c0_16 = arith.constant 0 : index
    %c0_17 = arith.constant 0 : index
    %34 = vector.load %arg6[%c0_16, %c0_17] : memref<16x128xf32, #tpu.memory_space<vmem>>, vector<16x128xf32>
    tpu.vector_store %arg6[%c0_16, %c0_17], %33 {strides = array<i32>} : memref<16x128xf32, #tpu.memory_space<vmem>>, vector<16x128xf32>,
    return
  }
  func.func @transform_0(%arg0: i32) -> (i32, i32) {
    %c0_i32 = arith.constant 0 : i32
    %c0_i32_0 = arith.constant 0 : i32
    return %arg0, %c0_i32 : i32, i32
  }
  func.func @transform_1(%arg0: i32) -> (i32, i32) {
    %c0_i32 = arith.constant 0 : i32
    %c0_i32_0 = arith.constant 0 : i32
    %c0_i32_1 = arith.constant 0 : i32
    return %c0_i32, %c0_i32_0 : i32, i32
  }
  func.func @transform_2(%arg0: i32) -> (i32, i32) {
    %c0_i32 = arith.constant 0 : i32
    %c0_i32_0 = arith.constant 0 : i32
    %c0_i32_1 = arith.constant 0 : i32
    return %c0_i32, %c0_i32_0 : i32, i32
  }
  func.func @transform_3(%arg0: i32) -> (i32, i32) {
    %c0_i32 = arith.constant 0 : i32
    %c0_i32_0 = arith.constant 0 : i32
    %c0_i32_1 = arith.constant 0 : i32
    return %c0_i32, %c0_i32_0 : i32, i32
  }
  func.func @transform_4(%arg0: i32) -> (i32, i32) {
    %c0_i32 = arith.constant 0 : i32
    %c0_i32_0 = arith.constant 0 : i32
    %c0_i32_1 = arith.constant 0 : i32
    return %c0_i32, %c0_i32_0 : i32, i32
  }
  func.func @transform_5(%arg0: i32) -> (i32, i32) {
    %c0_i32 = arith.constant 0 : i32
    %c0_i32_0 = arith.constant 0 : i32
    return %arg0, %c0_i32 : i32, i32
  }
}

module attributes {stable_mosaic.version = 11 : i64} {
  func.func @_attn_block_kernel(%arg0: i32, %arg1: memref<1x8x128xf32, #tpu.memory_space<vmem>>, %arg2: memref<128x384xbf16, #tpu.memory_space<vmem>>, %arg3: memref<128x128xbf16, #tpu.memory_space<vmem>>, %arg4: memref<1x128xf32, #tpu.memory_space<vmem>>, %arg5: memref<1x128xf32, #tpu.memory_space<vmem>>, %arg6: memref<1x8x128xf32, #tpu.memory_space<vmem>>) attributes {dimension_semantics = [#tpu.dimension_semantics<parallel>], iteration_bounds = array<i64: 2>, scalar_prefetch = 0 : i64, scratch_operands = 0 : i64, tpu.core_type = #tpu.core_type<tc>, window_params = [{transform_indices = @transform_0, window_bounds = array<i64: 1, 8, 128>}, {pipeline_mode = #tpu.pipeline_mode<synchronous>, transform_indices = @transform_1, window_bounds = array<i64: 128, 384>}, {pipeline_mode = #tpu.pipeline_mode<synchronous>, transform_indices = @transform_2, window_bounds = array<i64: 128, 128>}, {pipeline_mode = #tpu.pipeline_mode<synchronous>, transform_indices = @transform_3, window_bounds = array<i64: 1, 128>}, {pipeline_mode = #tpu.pipeline_mode<synchronous>, transform_indices = @transform_4, window_bounds = array<i64: 1, 128>}, {transform_indices = @transform_5, window_bounds = array<i64: 1, 8, 128>}]} {
    %c0 = arith.constant 0 : index
    %c0_0 = arith.constant 0 : index
    %c0_1 = arith.constant 0 : index
    %0 = vector.load %arg1[%c0, %c0_0, %c0_1] : memref<1x8x128xf32, #tpu.memory_space<vmem>>, vector<1x8x128xf32>
    %1 = vector.shape_cast %0 : vector<1x8x128xf32> to vector<8x128xf32>
    %2 = arith.truncf %1 : vector<8x128xf32> to vector<8x128xbf16>
    %c0_2 = arith.constant 0 : index
    %c0_3 = arith.constant 0 : index
    %3 = vector.load %arg2[%c0_2, %c0_3] : memref<128x384xbf16, #tpu.memory_space<vmem>>, vector<128x384xbf16>
    %cst = arith.constant dense<0.000000e+00> : vector<8x384xf32>
    %4 = tpu.matmul %2, %3, %cst {dimension_numbers = #tpu.dot_dimension_numbers<[1], [0], [0], [1], [0, 0, 1, 1], [], []>} : vector<8x128xbf16>, vector<128x384xbf16>, vector<8x384xf32> -> vector<8x384xf32>
    %5 = tpu.iota {dimensions = array<i32: 0>} : vector<8x8xi32>
    %6 = tpu.iota {dimensions = array<i32: 1>} : vector<8x8xi32>
    %7 = arith.cmpi sgt, %6, %5 : vector<8x8xi32>
    %8 = vector.extract_strided_slice %4 {offsets = [0, 0], sizes = [8, 64], strides = [1, 1]} : vector<8x384xf32> to vector<8x64xf32>
    %9 = arith.truncf %8 : vector<8x64xf32> to vector<8x64xbf16>
    %10 = vector.extract_strided_slice %4 {offsets = [0, 128], sizes = [8, 64], strides = [1, 1]} : vector<8x384xf32> to vector<8x64xf32>
    %11 = arith.truncf %10 : vector<8x64xf32> to vector<8x64xbf16>
    %12 = vector.extract_strided_slice %4 {offsets = [0, 256], sizes = [8, 64], strides = [1, 1]} : vector<8x384xf32> to vector<8x64xf32>
    %13 = arith.truncf %12 : vector<8x64xf32> to vector<8x64xbf16>
    %cst_4 = arith.constant dense<0.000000e+00> : vector<8x8xf32>
    %14 = tpu.matmul %9, %11, %cst_4 {dimension_numbers = #tpu.dot_dimension_numbers<[1], [1], [0], [0], [0, 0, 1, 0], [], []>} : vector<8x64xbf16>, vector<8x64xbf16>, vector<8x8xf32> -> vector<8x8xf32>
    %cst_5 = arith.constant 1.250000e-01 : f32
    %15 = vector.broadcast %cst_5 : f32 to vector<8x8xf32>
    %16 = arith.mulf %14, %15 : vector<8x8xf32>
    %cst_6 = arith.constant -1.000000e+07 : f32
    %17 = vector.broadcast %cst_6 : f32 to vector<8x8xf32>
    %18 = arith.select %7, %17, %16 : vector<8x8xi1>, vector<8x8xf32>
    %cst_7 = arith.constant dense<0xFF800000> : vector<8xf32>
    %19 = vector.multi_reduction <maximumf>, %18, %cst_7 [1] : vector<8x8xf32> to vector<8xf32>
    %20 = vector.shape_cast %19 : vector<8xf32> to vector<8x1xf32>
    %21 = vector.broadcast %20 : vector<8x1xf32> to vector<8x8xf32>
    %22 = arith.subf %18, %21 : vector<8x8xf32>
    %23 = math.exp %22 : vector<8x8xf32>
    %cst_8 = arith.constant dense<0.000000e+00> : vector<8xf32>
    %24 = vector.multi_reduction <add>, %23, %cst_8 [1] : vector<8x8xf32> to vector<8xf32>
    %25 = vector.shape_cast %24 : vector<8xf32> to vector<8x1xf32>
    %26 = tpu.reciprocal %25 {approx = true} : vector<8x1xf32> -> vector<8x1xf32>
    %27 = vector.broadcast %26 : vector<8x1xf32> to vector<8x8xf32>
    %28 = arith.mulf %23, %27 : vector<8x8xf32>
    %29 = arith.truncf %28 : vector<8x8xf32> to vector<8x8xbf16>
    %cst_9 = arith.constant dense<0.000000e+00> : vector<8x64xf32>
    %30 = tpu.matmul %29, %13, %cst_9 {dimension_numbers = #tpu.dot_dimension_numbers<[1], [0], [0], [1], [0, 0, 1, 1], [], []>} : vector<8x8xbf16>, vector<8x64xbf16>, vector<8x64xf32> -> vector<8x64xf32>
    %31 = vector.extract_strided_slice %4 {offsets = [0, 64], sizes = [8, 64], strides = [1, 1]} : vector<8x384xf32> to vector<8x64xf32>
    %32 = arith.truncf %31 : vector<8x64xf32> to vector<8x64xbf16>
    %33 = vector.extract_strided_slice %4 {offsets = [0, 192], sizes = [8, 64], strides = [1, 1]} : vector<8x384xf32> to vector<8x64xf32>
    %34 = arith.truncf %33 : vector<8x64xf32> to vector<8x64xbf16>
    %35 = vector.extract_strided_slice %4 {offsets = [0, 320], sizes = [8, 64], strides = [1, 1]} : vector<8x384xf32> to vector<8x64xf32>
    %36 = arith.truncf %35 : vector<8x64xf32> to vector<8x64xbf16>
    %cst_10 = arith.constant dense<0.000000e+00> : vector<8x8xf32>
    %37 = tpu.matmul %32, %34, %cst_10 {dimension_numbers = #tpu.dot_dimension_numbers<[1], [1], [0], [0], [0, 0, 1, 0], [], []>} : vector<8x64xbf16>, vector<8x64xbf16>, vector<8x8xf32> -> vector<8x8xf32>
    %cst_11 = arith.constant 1.250000e-01 : f32
    %38 = vector.broadcast %cst_11 : f32 to vector<8x8xf32>
    %39 = arith.mulf %37, %38 : vector<8x8xf32>
    %cst_12 = arith.constant -1.000000e+07 : f32
    %40 = vector.broadcast %cst_12 : f32 to vector<8x8xf32>
    %41 = arith.select %7, %40, %39 : vector<8x8xi1>, vector<8x8xf32>
    %cst_13 = arith.constant dense<0xFF800000> : vector<8xf32>
    %42 = vector.multi_reduction <maximumf>, %41, %cst_13 [1] : vector<8x8xf32> to vector<8xf32>
    %43 = vector.shape_cast %42 : vector<8xf32> to vector<8x1xf32>
    %44 = vector.broadcast %43 : vector<8x1xf32> to vector<8x8xf32>
    %45 = arith.subf %41, %44 : vector<8x8xf32>
    %46 = math.exp %45 : vector<8x8xf32>
    %cst_14 = arith.constant dense<0.000000e+00> : vector<8xf32>
    %47 = vector.multi_reduction <add>, %46, %cst_14 [1] : vector<8x8xf32> to vector<8xf32>
    %48 = vector.shape_cast %47 : vector<8xf32> to vector<8x1xf32>
    %49 = tpu.reciprocal %48 {approx = true} : vector<8x1xf32> -> vector<8x1xf32>
    %50 = vector.broadcast %49 : vector<8x1xf32> to vector<8x8xf32>
    %51 = arith.mulf %46, %50 : vector<8x8xf32>
    %52 = arith.truncf %51 : vector<8x8xf32> to vector<8x8xbf16>
    %cst_15 = arith.constant dense<0.000000e+00> : vector<8x64xf32>
    %53 = tpu.matmul %52, %36, %cst_15 {dimension_numbers = #tpu.dot_dimension_numbers<[1], [0], [0], [1], [0, 0, 1, 1], [], []>} : vector<8x8xbf16>, vector<8x64xbf16>, vector<8x64xf32> -> vector<8x64xf32>
    %54 = tpu.concatenate %30, %53 in 1 : vector<8x64xf32>, vector<8x64xf32> -> vector<8x128xf32>
    %55 = arith.truncf %54 : vector<8x128xf32> to vector<8x128xbf16>
    %c0_16 = arith.constant 0 : index
    %c0_17 = arith.constant 0 : index
    %56 = vector.load %arg3[%c0_16, %c0_17] : memref<128x128xbf16, #tpu.memory_space<vmem>>, vector<128x128xbf16>
    %cst_18 = arith.constant dense<0.000000e+00> : vector<8x128xf32>
    %57 = tpu.matmul %55, %56, %cst_18 {dimension_numbers = #tpu.dot_dimension_numbers<[1], [0], [0], [1], [0, 0, 1, 1], [], []>} : vector<8x128xbf16>, vector<128x128xbf16>, vector<8x128xf32> -> vector<8x128xf32>
    %58 = arith.addf %57, %1 : vector<8x128xf32>
    %cst_19 = arith.constant dense<0.000000e+00> : vector<8xf32>
    %59 = vector.multi_reduction <add>, %58, %cst_19 [1] : vector<8x128xf32> to vector<8xf32>
    %60 = vector.shape_cast %59 : vector<8xf32> to vector<8x1xf32>
    %cst_20 = arith.constant 1.280000e+02 : f32
    %61 = vector.broadcast %cst_20 : f32 to vector<8x1xf32>
    %62 = arith.divf %60, %61 : vector<8x1xf32>
    %63 = vector.broadcast %62 : vector<8x1xf32> to vector<8x128xf32>
    %64 = arith.subf %58, %63 : vector<8x128xf32>
    %65 = arith.mulf %64, %64 : vector<8x128xf32>
    %cst_21 = arith.constant dense<0.000000e+00> : vector<8xf32>
    %66 = vector.multi_reduction <add>, %65, %cst_21 [1] : vector<8x128xf32> to vector<8xf32>
    %67 = vector.shape_cast %66 : vector<8xf32> to vector<8x1xf32>
    %cst_22 = arith.constant 1.280000e+02 : f32
    %68 = vector.broadcast %cst_22 : f32 to vector<8x1xf32>
    %69 = arith.divf %67, %68 : vector<8x1xf32>
    %70 = vector.broadcast %62 : vector<8x1xf32> to vector<8x128xf32>
    %71 = arith.subf %58, %70 : vector<8x128xf32>
    %cst_23 = arith.constant 9.99999974E-6 : f32
    %72 = vector.broadcast %cst_23 : f32 to vector<8x1xf32>
    %73 = arith.addf %69, %72 : vector<8x1xf32>
    %74 = math.rsqrt %73 : vector<8x1xf32>
    %75 = vector.broadcast %74 : vector<8x1xf32> to vector<8x128xf32>
    %76 = arith.mulf %71, %75 : vector<8x128xf32>
    %c0_24 = arith.constant 0 : index
    %c0_25 = arith.constant 0 : index
    %77 = vector.load %arg4[%c0_24, %c0_25] : memref<1x128xf32, #tpu.memory_space<vmem>>, vector<1x128xf32>
    %78 = vector.broadcast %77 : vector<1x128xf32> to vector<8x128xf32>
    %79 = arith.mulf %76, %78 : vector<8x128xf32>
    %c0_26 = arith.constant 0 : index
    %c0_27 = arith.constant 0 : index
    %80 = vector.load %arg5[%c0_26, %c0_27] : memref<1x128xf32, #tpu.memory_space<vmem>>, vector<1x128xf32>
    %81 = vector.broadcast %80 : vector<1x128xf32> to vector<8x128xf32>
    %82 = arith.addf %79, %81 : vector<8x128xf32>
    %c0_28 = arith.constant 0 : index
    %c0_29 = arith.constant 0 : index
    %c0_30 = arith.constant 0 : index
    %83 = vector.load %arg6[%c0_28, %c0_29, %c0_30] : memref<1x8x128xf32, #tpu.memory_space<vmem>>, vector<1x8x128xf32>
    %84 = vector.shape_cast %83 : vector<1x8x128xf32> to vector<8x128xf32>
    %85 = vector.shape_cast %82 : vector<8x128xf32> to vector<1x8x128xf32>
    tpu.vector_store %arg6[%c0_28, %c0_29, %c0_30], %85 {strides = array<i32>} : memref<1x8x128xf32, #tpu.memory_space<vmem>>, vector<1x8x128xf32>,
    return
  }
  func.func @transform_0(%arg0: i32) -> (i32, i32, i32) {
    %c0_i32 = arith.constant 0 : i32
    %c0_i32_0 = arith.constant 0 : i32
    %c0_i32_1 = arith.constant 0 : i32
    return %arg0, %c0_i32, %c0_i32_0 : i32, i32, i32
  }
  func.func @transform_1(%arg0: i32) -> (i32, i32) {
    %c0_i32 = arith.constant 0 : i32
    %c0_i32_0 = arith.constant 0 : i32
    %c0_i32_1 = arith.constant 0 : i32
    return %c0_i32, %c0_i32_0 : i32, i32
  }
  func.func @transform_2(%arg0: i32) -> (i32, i32) {
    %c0_i32 = arith.constant 0 : i32
    %c0_i32_0 = arith.constant 0 : i32
    %c0_i32_1 = arith.constant 0 : i32
    return %c0_i32, %c0_i32_0 : i32, i32
  }
  func.func @transform_3(%arg0: i32) -> (i32, i32) {
    %c0_i32 = arith.constant 0 : i32
    %c0_i32_0 = arith.constant 0 : i32
    %c0_i32_1 = arith.constant 0 : i32
    return %c0_i32, %c0_i32_0 : i32, i32
  }
  func.func @transform_4(%arg0: i32) -> (i32, i32) {
    %c0_i32 = arith.constant 0 : i32
    %c0_i32_0 = arith.constant 0 : i32
    %c0_i32_1 = arith.constant 0 : i32
    return %c0_i32, %c0_i32_0 : i32, i32
  }
  func.func @transform_5(%arg0: i32) -> (i32, i32, i32) {
    %c0_i32 = arith.constant 0 : i32
    %c0_i32_0 = arith.constant 0 : i32
    %c0_i32_1 = arith.constant 0 : i32
    return %arg0, %c0_i32, %c0_i32_0 : i32, i32, i32
  }
}

</mosaic_0001>

<llo_original>
// kernel: decoder_layer.2
$region0: #{decoder_layer.2}
  #allocation0 [shape = 'u32[]', space=smem, size = 0x4, offset = 0x4, fixed_abs, tag = 'smem constant byte address 0x4 - core index']
  #allocation1 [shape = 'u32[72,128]{1,0:T(1,128)}', space=vmem, size = 0x9000, scoped, tag = 'internal scratch']
  %s0 = inlined_call_operand.hbm [shape: f32[2,8,128], index: 0, kind: input, shape index: {}]
  %s1 = inlined_call_operand.hbm [shape: bf16[128,384], index: 1, kind: input, shape index: {}]
  %s2 = inlined_call_operand.hbm [shape: bf16[128,128], index: 2, kind: input, shape index: {}]
  %s3 = inlined_call_operand.vmem [shape: f32[1,128], index: 3, kind: input, shape index: {}]
  %s4 = inlined_call_operand.hbm [shape: f32[1,128], index: 4, kind: input, shape index: {}]
  %s5 = inlined_call_operand.vmem [shape: f32[2,8,128], index: 5, kind: output, shape index: {}]
  %s6 = sld [smem:[#allocation0]]
  $region69: #{decoder_layer.2} parent=0
    _
  %s8 = ssub.s32 1, %s6
  %s9 = scalar_select 0, %s8, %s6
  $region1: #{decoder_layer.2} parent=0
    #allocation2 [shape = 'u8[8192]{0}', space=vmem, size = 0x2000, scoped, tag = 'input window, operand 0']
    #allocation3 [shape = 's32[2]{0}', space=sflag, size = 0x8, scoped, tag = 'scoped memory for decoder_layer.2']
    #allocation4 [shape = 'u8[98304]{0}', space=vmem, size = 0x18000, scoped, tag = 'input window, operand 1, single buffered']
    #allocation5 [shape = 's32[1]{0}', space=sflag, size = 0x4, scoped, tag = 'scoped memory for decoder_layer.2']
    #allocation6 [shape = 'u8[32768]{0}', space=vmem, size = 0x8000, scoped, tag = 'input window, operand 2, single buffered']
    #allocation7 [shape = 'u8[512]{0}', space=vmem, size = 0x400, scoped, tag = 'input window, operand 4, single buffered']
    #allocation8 [shape = 's32[1]{0}', space=sflag, size = 0x4, scoped, tag = 'scoped memory for decoder_layer.2']
    %10 = vsyncpa [#allocation3], 0
    %s11 = scalar_lea.sflag [#allocation3], 1
    %12 = vsyncpa %s11, 0
    %13 = vsyncpa [#allocation5], 0
    %14 = vsyncpa [#allocation8], 0
    loop: start=0, step=1, limit=4
    $region2: #{decoder_layer.2} parent=1 // loop_pre_header
      _
    $region3: #{decoder_layer.2} parent=1 // loop_header
      %s16 = sphi 0, %s20
      %p17 = scmp.ge.s32.totalorder %s16, 4
      %s26 = sphi 0, %s28
      %s29 = sphi 0, %s26
      %s30 = sphi 0, %s29
      %s46 = sphi 0, %s30
      %s50 = sphi 0, %s50
      %s52 = sphi 0, %s50
      %s53 = sphi 0, %s52
      %s67 = sphi 0, %s53
      %s71 = sphi 0, %s71
      %s73 = sphi 0, %s71
      %s74 = sphi 0, %s73
      %s88 = sphi 0, %s74
      %s92 = sphi 0, %s92
      %s94 = sphi 0, %s92
      %s95 = sphi 0, %s94
      %s109 = sphi 0, %s95
      %s113 = sphi 0, %s113
      %s115 = sphi 0, %s113
      %s116 = sphi 0, %s115
      %s130 = sphi 0, %s116
      %s136 = sphi 0, %s138
      %s139 = sphi 0, %s136
      %s140 = sphi 0, %s139
      %s156 = sphi 0, %s140
    $region4: #{decoder_layer.2} parent=1 // loop_header_branch
      %19 = sbr.rel (%p17) target = $region8
    $region5: #{decoder_layer.2} parent=1 // loop_body
      %s21 = ssub.s32 %s16, 1
      %s22 = ssub.s32 %s16, 2
      %s23 = sadd.s32 %s16, 1
      %s24 = ssub.s32 %s16, %s23
      %p25 = scmp.eq.s32.totalorder %s24, 0
      %s27 = sadd.s32 %s26, 1
      %s28 = scalar_select %p25, %s26, %s27
      %p31 = pneg %p25
      %p32 = scmp.eq.s32.totalorder %s16, 1
      %p33 = por %p31, %p32
      %p34 = scmp.ne.s32.totalorder %s26, %s29
      %p35 = scmp.eq.s32.totalorder %s16, 0
      %p36 = por %p34, %p35
      %p37 = scmp.ne.s32.totalorder %s26, %s29
      %p38 = scmp.eq.s32.totalorder %s21, 1
      %p39 = por %p37, %p38
      %p40 = scmp.ne.s32.totalorder %s29, %s30
      %p41 = scmp.eq.s32.totalorder %s21, 0
      %p42 = por %p40, %p41
      %p43 = scmp.ne.s32.totalorder %s29, %s30
      %p44 = scmp.eq.s32.totalorder %s22, 1
      %p45 = por %p43, %p44
      %p47 = scmp.ne.s32.totalorder %s30, %s46
      %p48 = scmp.eq.s32.totalorder %s22, 0
      %p49 = por %p47, %p48
      %s51 = sadd.s32 %s50, 1
      %p54 = scmp.eq.s32.totalorder %s16, 1
      %p55 = scmp.ne.s32.totalorder %s50, %s52
      %p56 = scmp.eq.s32.totalorder %s16, 0
      %p57 = por %p55, %p56
      %p58 = scmp.ne.s32.totalorder %s50, %s52
      %p59 = scmp.eq.s32.totalorder %s21, 1
      %p60 = por %p58, %p59
      %p61 = scmp.ne.s32.totalorder %s52, %s53
      %p62 = scmp.eq.s32.totalorder %s21, 0
      %p63 = por %p61, %p62
      %p64 = scmp.ne.s32.totalorder %s52, %s53
      %p65 = scmp.eq.s32.totalorder %s22, 1
      %p66 = por %p64, %p65
      %p68 = scmp.ne.s32.totalorder %s53, %s67
      %p69 = scmp.eq.s32.totalorder %s22, 0
      %p70 = por %p68, %p69
      %s72 = sadd.s32 %s71, 1
      %p75 = scmp.eq.s32.totalorder %s16, 1
      %p76 = scmp.ne.s32.totalorder %s71, %s73
      %p77 = scmp.eq.s32.totalorder %s16, 0
      %p78 = por %p76, %p77
      %p79 = scmp.ne.s32.totalorder %s71, %s73
      %p80 = scmp.eq.s32.totalorder %s21, 1
      %p81 = por %p79, %p80
      %p82 = scmp.ne.s32.totalorder %s73, %s74
      %p83 = scmp.eq.s32.totalorder %s21, 0
      %p84 = por %p82, %p83
      %p85 = scmp.ne.s32.totalorder %s73, %s74
      %p86 = scmp.eq.s32.totalorder %s22, 1
      %p87 = por %p85, %p86
      %p89 = scmp.ne.s32.totalorder %s74, %s88
      %p90 = scmp.eq.s32.totalorder %s22, 0
      %p91 = por %p89, %p90
      %s93 = sadd.s32 %s92, 1
      %p96 = scmp.eq.s32.totalorder %s16, 1
      %p97 = scmp.ne.s32.totalorder %s92, %s94
      %p98 = scmp.eq.s32.totalorder %s16, 0
      %p99 = por %p97, %p98
      %p100 = scmp.ne.s32.totalorder %s92, %s94
      %p101 = scmp.eq.s32.totalorder %s21, 1
      %p102 = por %p100, %p101
      %p103 = scmp.ne.s32.totalorder %s94, %s95
      %p104 = scmp.eq.s32.totalorder %s21, 0
      %p105 = por %p103, %p104
      %p106 = scmp.ne.s32.totalorder %s94, %s95
      %p107 = scmp.eq.s32.totalorder %s22, 1
      %p108 = por %p106, %p107
      %p110 = scmp.ne.s32.totalorder %s95, %s109
      %p111 = scmp.eq.s32.totalorder %s22, 0
      %p112 = por %p110, %p111
      %s114 = sadd.s32 %s113, 1
      %p117 = scmp.eq.s32.totalorder %s16, 1
      %p118 = scmp.ne.s32.totalorder %s113, %s115
      %p119 = scmp.eq.s32.totalorder %s16, 0
      %p120 = por %p118, %p119
      %p121 = scmp.ne.s32.totalorder %s113, %s115
      %p122 = scmp.eq.s32.totalorder %s21, 1
      %p123 = por %p121, %p122
      %p124 = scmp.ne.s32.totalorder %s115, %s116
      %p125 = scmp.eq.s32.totalorder %s21, 0
      %p126 = por %p124, %p125
      %p127 = scmp.ne.s32.totalorder %s115, %s116
      %p128 = scmp.eq.s32.totalorder %s22, 1
      %p129 = por %p127, %p128
      %p131 = scmp.ne.s32.totalorder %s116, %s130
      %p132 = scmp.eq.s32.totalorder %s22, 0
      %p133 = por %p131, %p132
      %s134 = ssub.s32 %s16, %s23
      %p135 = scmp.eq.s32.totalorder %s134, 0
      %s137 = sadd.s32 %s136, 1
      %s138 = scalar_select %p135, %s136, %s137
      %p141 = pneg %p135
      %p142 = scmp.eq.s32.totalorder %s16, 1
      %p143 = por %p141, %p142
      %p144 = scmp.ne.s32.totalorder %s136, %s139
      %p145 = scmp.eq.s32.totalorder %s16, 0
      %p146 = por %p144, %p145
      %p147 = scmp.ne.s32.totalorder %s136, %s139
      %p148 = scmp.eq.s32.totalorder %s21, 1
      %p149 = por %p147, %p148
      %p150 = scmp.ne.s32.totalorder %s139, %s140
      %p151 = scmp.eq.s32.totalorder %s21, 0
      %p152 = por %p150, %p151
      %p153 = scmp.ne.s32.totalorder %s139, %s140
      %p154 = scmp.eq.s32.totalorder %s22, 1
      %p155 = por %p153, %p154
      %p157 = scmp.ne.s32.totalorder %s140, %s156
      %p158 = scmp.eq.s32.totalorder %s22, 0
      %p159 = por %p157, %p158
      %p160 = scmp.le.s32.totalorder 1, %s16
      %p161 = scmp.lt.s32.totalorder %s16, 3
      %p162 = pnand %p160, %p161
      %p163 = pneg %p162
      // Predicated region
      $region9: #{decoder_layer.2} parent=5 // pred_check
        _
      $region10: #{decoder_layer.2} parent=5 // pred_check_branch
        %165 = sbr.rel (%p162) target = $region12
      $region11: #{decoder_layer.2} parent=5 // pred_region
        %s166 = ssub.s32 %s16, 1
        // Predicated region
        $region13: #{decoder_layer.2} parent=11 // pred_check
          %p167 = pneg %p63
        $region14: #{decoder_layer.2} parent=11 // pred_check_branch
          %169 = sbr.rel (%p167) target = $region16
        $region15: #{decoder_layer.2} parent=11 // pred_region
          %171 = vsyncadd [#allocation5], 0
          %s172 = sshll.u32 %s1, 4
          %s173 = int_to_ptr.hbm [resolvable:$true] %s172
          %s174 = sshll.u32 [#allocation4], 4
          %s175 = int_to_ptr.vmem [resolvable:$true] %s174
          %180 = dma.hbm_to_vmem [thread:$0]  %s173, 3072, %s175, [#allocation5], 192, 192, 12
        $region16: #{decoder_layer.2} parent=11 // pred_fallthru
          _
        // Predicated region
        $region17: #{decoder_layer.2} parent=11 // pred_check
          %p181 = pneg %p84
        $region18: #{decoder_layer.2} parent=11 // pred_check_branch
          %183 = sbr.rel (%p181) target = $region20
        $region19: #{decoder_layer.2} parent=11 // pred_region
          %185 = vsyncadd [#allocation5], 0
          %s186 = sshll.u32 %s2, 4
          %s187 = int_to_ptr.hbm [resolvable:$true] %s186
          %s188 = sshll.u32 [#allocation6], 4
          %s189 = int_to_ptr.vmem [resolvable:$true] %s188
          %194 = dma.hbm_to_vmem [thread:$0]  %s187, 1024, %s189, [#allocation5], 64, 64, 4
        $region20: #{decoder_layer.2} parent=11 // pred_fallthru
          _
        // Predicated region
        $region21: #{decoder_layer.2} parent=11 // pred_check
          %p195 = pneg %p105
        $region22: #{decoder_layer.2} parent=11 // pred_check_branch
          %197 = sbr.rel (%p195) target = $region24
        $region23: #{decoder_layer.2} parent=11 // pred_region
          _
        $region24: #{decoder_layer.2} parent=11 // pred_fallthru
          _
        // Predicated region
        $region25: #{decoder_layer.2} parent=11 // pred_check
          %p198 = pneg %p126
        $region26: #{decoder_layer.2} parent=11 // pred_check_branch
          %200 = sbr.rel (%p198) target = $region28
        $region27: #{decoder_layer.2} parent=11 // pred_region
          %202 = vsyncadd [#allocation8], 0
          %s204 = sshll.u32 %s4, 4
          %s205 = int_to_ptr.hbm [resolvable:$true] %s204
          %s206 = sshll.u32 [#allocation7], 4
          %s207 = int_to_ptr.vmem [resolvable:$true] %s206
          %209 = dma.hbm_to_vmem [thread:$0]  %s205, 16, %s207, [#allocation8]
        $region28: #{decoder_layer.2} parent=11 // pred_fallthru
          _
      $region12: #{decoder_layer.2} parent=5 // pred_fallthru
        _
      %p210 = scmp.lt.s32.totalorder %s16, 2
      // Predicated region
      $region29: #{decoder_layer.2} parent=5 // pred_check
        %p211 = pneg %p210
      $region30: #{decoder_layer.2} parent=5 // pred_check_branch
        %213 = sbr.rel (%p211) target = $region32
      $region31: #{decoder_layer.2} parent=5 // pred_region
        // Predicated region
        $region33: #{decoder_layer.2} parent=31 // pred_check
          %p214 = pneg %p36
        $region34: #{decoder_layer.2} parent=31 // pred_check_branch
          %216 = sbr.rel (%p214) target = $region36
        $region35: #{decoder_layer.2} parent=31 // pred_region
          %s217 = sand.u32 %s26, 1
          %s218 = scalar_lea.sflag [#allocation3], %s217
          %s219 = sand.u32 %s26, 1
          %s220 = smul.addr %s219, 8
          %s221 = scalar_lea.vmem [#allocation2], %s220
          %223 = vsyncadd %s218, 0
          %s224 = smul.addr %s16, 8
          %s225 = scalar_lea.hbm %s0, %s224
          %s227 = sshll.u32 %s225, 4
          %s228 = int_to_ptr.hbm [resolvable:$true] %s227
          %s229 = sshll.u32 %s221, 4
          %s230 = int_to_ptr.vmem [resolvable:$true] %s229
          %232 = dma.hbm_to_vmem [thread:$0]  %s228, 128, %s230, %s218
        $region36: #{decoder_layer.2} parent=31 // pred_fallthru
          _
      $region32: #{decoder_layer.2} parent=5 // pred_fallthru
        _
      %p233 = scmp.le.s32.totalorder 1, %s16
      %p234 = scmp.lt.s32.totalorder %s16, 3
      %p235 = pnand %p233, %p234
      %p236 = pneg %p235
      // Predicated region
      $region37: #{decoder_layer.2} parent=5 // pred_check
        _
      $region38: #{decoder_layer.2} parent=5 // pred_check_branch
        %238 = sbr.rel (%p235) target = $region40
      $region39: #{decoder_layer.2} parent=5 // pred_region
        %s239 = ssub.s32 %s16, 1
        %s240 = sand.u32 %s29, 1
        %s241 = scalar_lea.sflag [#allocation3], %s240
        %s242 = sand.u32 %s29, 1
        %s243 = smul.addr %s242, 8
        %s244 = scalar_lea.vmem [#allocation2], %s243
        // Predicated region
        $region41: #{decoder_layer.2} parent=39 // pred_check
          %p245 = pneg %p42
        $region42: #{decoder_layer.2} parent=39 // pred_check_branch
          %247 = sbr.rel (%p245) target = $region44
        $region43: #{decoder_layer.2} parent=39 // pred_region
          %249 = dma.done %s241, 128
        $region44: #{decoder_layer.2} parent=39 // pred_fallthru
          _
        // Predicated region
        $region45: #{decoder_layer.2} parent=39 // pred_check
          %p250 = pneg %p63
        $region46: #{decoder_layer.2} parent=39 // pred_check_branch
          %252 = sbr.rel (%p250) target = $region48
        $region47: #{decoder_layer.2} parent=39 // pred_region
          %254 = dma.done [#allocation5], 3072
        $region48: #{decoder_layer.2} parent=39 // pred_fallthru
          _
        // Predicated region
        $region49: #{decoder_layer.2} parent=39 // pred_check
          %p255 = pneg %p84
        $region50: #{decoder_layer.2} parent=39 // pred_check_branch
          %257 = sbr.rel (%p255) target = $region52
        $region51: #{decoder_layer.2} parent=39 // pred_region
          %259 = dma.done [#allocation5], 1024
        $region52: #{decoder_layer.2} parent=39 // pred_fallthru
          _
        // Predicated region
        $region53: #{decoder_layer.2} parent=39 // pred_check
          %p260 = pneg %p126
        $region54: #{decoder_layer.2} parent=39 // pred_check_branch
          %262 = sbr.rel (%p260) target = $region56
        $region55: #{decoder_layer.2} parent=39 // pred_region
          %264 = dma.done [#allocation8], 16
        $region56: #{decoder_layer.2} parent=39 // pred_fallthru
          _
        %s265 = sand.u32 %s29, 1
        %s266 = scalar_lea.sflag [#allocation3], %s265
        %s267 = sand.u32 %s29, 1
        %s268 = smul.addr %s267, 8
        %s269 = scalar_lea.vmem [#allocation2], %s268
        %p270 = pneg %p42
        %p271 = pneg %p39
        %p272 = pneg %p63
        %p273 = pneg %p60
        %p274 = pneg %p84
        %p275 = pneg %p81
        %p276 = pneg %p105
        %p277 = pneg %p102
        %p278 = pneg %p126
        %p279 = pneg %p123
        %p280 = pneg %p152
        %p281 = pneg %p149
        %p282 = scmp.lt.s32.totalorder %s21, 1
        %s283 = scalar_select %p282, %s21, 1
        %s284 = smul.addr %s283, 8
        %s285 = scalar_lea.vmem %s5, %s284
        %p286 = scmp.lt.s32.totalorder %s21, 1
        %s287 = scalar_select %p286, %s21, 1
        %s288 = smul.addr %s287, 8
        %s289 = scalar_lea.vmem %s5, %s288
        %v291 = vld [vmem:[%s244] sm:$0xff]
        %v292 = vpack.c.bf16 %v291, %v291
        %v293 = vld [vmem:[#allocation4] sm:$0xff]
        %v294 = vld [vmem:[#allocation4 + $0x8] sm:$0xf]
        %v295 = vld [vmem:[#allocation4 + $0xc] sm:$0xff]
        %v296 = vld [vmem:[#allocation4 + $0x14] sm:$0xf]
        %v297 = vld [vmem:[#allocation4 + $0x18] sm:$0xff]
        %v298 = vld [vmem:[#allocation4 + $0x20] sm:$0xf]
        %v299 = vld [vmem:[#allocation4 + $0x24] sm:$0xff]
        %v300 = vld [vmem:[#allocation4 + $0x2c] sm:$0xf]
        %v301 = vld [vmem:[#allocation4 + $0x30] sm:$0xff]
        %v302 = vld [vmem:[#allocation4 + $0x38] sm:$0xf]
        %v303 = vld [vmem:[#allocation4 + $0x3c] sm:$0xff]
        %v304 = vld [vmem:[#allocation4 + $0x44] sm:$0xf]
        %v305 = vld [vmem:[#allocation4 + $0x48] sm:$0xff]
        %v306 = vld [vmem:[#allocation4 + $0x50] sm:$0xf]
        %v307 = vld [vmem:[#allocation4 + $0x54] sm:$0xff]
        %v308 = vld [vmem:[#allocation4 + $0x5c] sm:$0xf]
        %v309 = vld [vmem:[#allocation4 + $0x60] sm:$0xff]
        %v310 = vld [vmem:[#allocation4 + $0x68] sm:$0xf]
        %v311 = vld [vmem:[#allocation4 + $0x6c] sm:$0xff]
        %v312 = vld [vmem:[#allocation4 + $0x74] sm:$0xf]
        %v313 = vld [vmem:[#allocation4 + $0x78] sm:$0xff]
        %v314 = vld [vmem:[#allocation4 + $0x80] sm:$0xf]
        %v315 = vld [vmem:[#allocation4 + $0x84] sm:$0xff]
        %v316 = vld [vmem:[#allocation4 + $0x8c] sm:$0xf]
        %v317 = vld [vmem:[#allocation4 + $0x90] sm:$0xff]
        %v318 = vld [vmem:[#allocation4 + $0x98] sm:$0xf]
        %v319 = vld [vmem:[#allocation4 + $0x9c] sm:$0xff]
        %v320 = vld [vmem:[#allocation4 + $0xa4] sm:$0xf]
        %v321 = vld [vmem:[#allocation4 + $0xa8] sm:$0xff]
        %v322 = vld [vmem:[#allocation4 + $0xb0] sm:$0xf]
        %v323 = vld [vmem:[#allocation4 + $0xb4] sm:$0xff]
        %v324 = vld [vmem:[#allocation4 + $0xbc] sm:$0xf]
        %v357 = vunpack.c.l.b16 %v293
        %v358 = vunpack.c.h.b16 %v293
        %v359 = vunpack.c.l.b16 %v294
        %v360 = vunpack.c.l.b16 %v295
        %v361 = vunpack.c.h.b16 %v295
        %v362 = vunpack.c.l.b16 %v296
        %v363 = vunpack.c.l.b16 %v297
        %v364 = vunpack.c.h.b16 %v297
        %v365 = vunpack.c.l.b16 %v298
        %v366 = vunpack.c.l.b16 %v299
        %v367 = vunpack.c.h.b16 %v299
        %v368 = vunpack.c.l.b16 %v300
        %v369 = vunpack.c.l.b16 %v301
        %v370 = vunpack.c.h.b16 %v301
        %v371 = vunpack.c.l.b16 %v302
        %v372 = vunpack.c.l.b16 %v303
        %v373 = vunpack.c.h.b16 %v303
        %v374 = vunpack.c.l.b16 %v304
        %v375 = vunpack.c.l.b16 %v305
        %v376 = vunpack.c.h.b16 %v305
        %v377 = vunpack.c.l.b16 %v306
        %v378 = vunpack.c.l.b16 %v307
        %v379 = vunpack.c.h.b16 %v307
        %v380 = vunpack.c.l.b16 %v308
        %v381 = vunpack.c.l.b16 %v309
        %v382 = vunpack.c.h.b16 %v309
        %v383 = vunpack.c.l.b16 %v310
        %v384 = vunpack.c.l.b16 %v311
        %v385 = vunpack.c.h.b16 %v311
        %v386 = vunpack.c.l.b16 %v312
        %v387 = vunpack.c.l.b16 %v313
        %v388 = vunpack.c.h.b16 %v313
        %v389 = vunpack.c.l.b16 %v314
        %v390 = vunpack.c.l.b16 %v315
        %v391 = vunpack.c.h.b16 %v315
        %v392 = vunpack.c.l.b16 %v316
        %v393 = vunpack.c.l.b16 %v317
        %v394 = vunpack.c.h.b16 %v317
        %v395 = vunpack.c.l.b16 %v318
        %v396 = vunpack.c.l.b16 %v319
        %v397 = vunpack.c.h.b16 %v319
        %v398 = vunpack.c.l.b16 %v320
        %v399 = vunpack.c.l.b16 %v321
        %v400 = vunpack.c.h.b16 %v321
        %v401 = vunpack.c.l.b16 %v322
        %v402 = vunpack.c.l.b16 %v323
        %v403 = vunpack.c.h.b16 %v323
        %v404 = vunpack.c.l.b16 %v324
        %v405 = vpack.c.b16 %v360, %v357
        %v406 = vpack.c.b16 %v361, %v358
        %v407 = vpack.c.b16 %v362, %v359
        %v408 = vpack.c.b16 %v366, %v363
        %v409 = vpack.c.b16 %v367, %v364
        %v410 = vpack.c.b16 %v368, %v365
        %v411 = vpack.c.b16 %v372, %v369
        %v412 = vpack.c.b16 %v373, %v370
        %v413 = vpack.c.b16 %v374, %v371
        %v414 = vpack.c.b16 %v378, %v375
        %v415 = vpack.c.b16 %v379, %v376
        %v416 = vpack.c.b16 %v380, %v377
        %v417 = vpack.c.b16 %v384, %v381
        %v418 = vpack.c.b16 %v385, %v382
        %v419 = vpack.c.b16 %v386, %v383
        %v420 = vpack.c.b16 %v390, %v387
        %v421 = vpack.c.b16 %v391, %v388
        %v422 = vpack.c.b16 %v392, %v389
        %v423 = vpack.c.b16 %v396, %v393
        %v424 = vpack.c.b16 %v397, %v394
        %v425 = vpack.c.b16 %v398, %v395
        %v426 = vpack.c.b16 %v402, %v399
        %v427 = vpack.c.b16 %v403, %v400
        %v428 = vpack.c.b16 %v404, %v401
        %453 = vmatpush.bf16.msra.mxu0 %v426
        %454 = vmatpush.bf16.msra.mxu0 %v423
        %455 = vmatpush.bf16.msra.mxu0 %v420
        %456 = vmatpush.bf16.msra.mxu0 %v417
        %457 = vmatpush.bf16.msra.mxu0 %v414
        %458 = vmatpush.bf16.msra.mxu0 %v411
        %459 = vmatpush.bf16.msra.mxu0 %v408
        %460 = vmatpush.bf16.msra.mxu0 %v405
        %461 = vmatmul.bf16.gmra.mxu0 %v292
        %v462 = vpop.f32.mrf.mxu0
        %v463 = vadd.f32 0.0, %v462
        %v464 = vpop.f32.mrf.mxu0
        %465 = vdwg.mxu0
        %466 = vmatpush.bf16.msra.mxu0 %v427
        %467 = vmatpush.bf16.msra.mxu0 %v424
        %468 = vmatpush.bf16.msra.mxu0 %v421
        %469 = vmatpush.bf16.msra.mxu0 %v418
        %470 = vmatpush.bf16.msra.mxu0 %v415
        %471 = vmatpush.bf16.msra.mxu0 %v412
        %472 = vmatpush.bf16.msra.mxu0 %v409
        %473 = vmatpush.bf16.msra.mxu0 %v406
        %474 = vmatmul.bf16.gmra.mxu0 %v292
        %v475 = vpop.f32.mrf.mxu0
        %v476 = vadd.f32 0.0, %v475
        %v477 = vpop.f32.mrf.mxu0
        %478 = vdwg.mxu0
        %479 = vmatpush.bf16.msra.mxu0 %v428
        %480 = vmatpush.bf16.msra.mxu0 %v425
        %481 = vmatpush.bf16.msra.mxu0 %v422
        %482 = vmatpush.bf16.msra.mxu0 %v419
        %483 = vmatpush.bf16.msra.mxu0 %v416
        %484 = vmatpush.bf16.msra.mxu0 %v413
        %485 = vmatpush.bf16.msra.mxu0 %v410
        %486 = vmatpush.bf16.msra.mxu0 %v407
        %487 = vmatmul.bf16.gmra.mxu0 %v292
        %v488 = vpop.f32.mrf.mxu0
        %v489 = vadd.f32 0.0, %v488
        %v490 = vpop.f32.mrf.mxu0
        %491 = vdwg.mxu0
        %v492 = vlaneseq
        %v493 = vshrl.u32 %v492, 7
        %v494 = vlaneseq
        %v495 = vand.u32 %v494, 127
        %vm496 = vcmp.gt.s32.totalorder %v495, %v493
        %v497 = vpack.c.bf16 %v463, %v463
        %v498 = vpack.c.bf16 %v476, %v476
        %v499 = vpack.c.bf16 %v489, %v489
        %vm500 = vcmask 523264
        %v502 = vsel %vm500, %v497, 0
        %v505 = vsel %vm500, %v498, 0
        %507 = vmatpush.bf16.xpose.msra.mxu0 0
        %508 = vmatpush.bf16.xpose.msra.mxu0 0
        %509 = vmatpush.bf16.xpose.msra.mxu0 0
        %510 = vmatpush.bf16.xpose.msra.mxu0 0
        %511 = vmatpush.bf16.xpose.msra.mxu0 0
        %512 = vmatpush.bf16.xpose.msra.mxu0 0
        %513 = vmatpush.bf16.xpose.msra.mxu0 0
        %514 = vmatpush.bf16.xpose.msra.mxu0 %v505
        %515 = vmatmul.bf16.gmra.mxu0 %v502
        %v516 = vpop.f32.mrf.mxu0
        %v517 = vadd.f32 0.0, %v516
        %v518 = vpop.f32.mrf.mxu0
        %519 = vdwg.mxu0
        %v520 = vmul.f32 %v517, 0.125
        %v521 = vsel %vm496, -10000000.0, %v520
        %vm522 = vcmask 64512
        %v523 = vsel %vm522, %v521, -inf
        %524 = vmax.xlane.f32.xlu0 %v523
        %v525 = vpop.xlane.xlu0 %524
        %v526 = vsub.f32 %v521, %v525
        %v527 = vmul.f32 %v526, 1.442695
        %v528 = vpow.pop %v527
        %v529 = vsel %vm522, %v528, 0.0
        %530 = vadd.xlane.f32.xlu0 %v529
        %v531 = vpop.xlane.xlu0 %530
        %v532 = vrcp.pop %v531
        %v533 = vmul.f32 %v528, %v532
        %v534 = vpack.c.bf16 %v533, %v533
        %v536 = vsel %vm522, %v534, 0
        %vm538 = vcmask 1043456
        %v540 = vsel %vm538, %v499, 0
        %542 = vmatpush.bf16.msra.mxu0 0
        %543 = vmatpush.bf16.msra.mxu0 0
        %544 = vmatpush.bf16.msra.mxu0 0
        %545 = vmatpush.bf16.msra.mxu0 0
        %546 = vmatpush.bf16.msra.mxu0 0
        %547 = vmatpush.bf16.msra.mxu0 0
        %548 = vmatpush.bf16.msra.mxu0 0
        %549 = vmatpush.bf16.msra.mxu0 %v540
        %550 = vmatmul.bf16.gmra.mxu0 %v536
        %v551 = vpop.f32.mrf.mxu0
        %v552 = vadd.f32 0.0, %v551
        %v553 = vpop.f32.mrf.mxu0
        %554 = vdwg.mxu0
        %556 = vrot.lane.b32.xlu0 %v497, 64
        %v557 = vpop.permute.xlu0 %556
        %559 = vrot.lane.b32.xlu0 %v498, 64
        %v560 = vpop.permute.xlu0 %559
        %v562 = vsel %vm500, %v557, 0
        %v565 = vsel %vm500, %v560, 0
        %567 = vmatpush.bf16.xpose.msra.mxu0 0
        %568 = vmatpush.bf16.xpose.msra.mxu0 0
        %569 = vmatpush.bf16.xpose.msra.mxu0 0
        %570 = vmatpush.bf16.xpose.msra.mxu0 0
        %571 = vmatpush.bf16.xpose.msra.mxu0 0
        %572 = vmatpush.bf16.xpose.msra.mxu0 0
        %573 = vmatpush.bf16.xpose.msra.mxu0 0
        %574 = vmatpush.bf16.xpose.msra.mxu0 %v565
        %575 = vmatmul.bf16.gmra.mxu0 %v562
        %v576 = vpop.f32.mrf.mxu0
        %v577 = vadd.f32 0.0, %v576
        %v578 = vpop.f32.mrf.mxu0
        %579 = vdwg.mxu0
        %v580 = vmul.f32 %v577, 0.125
        %v581 = vsel %vm496, -10000000.0, %v580
        %v582 = vsel %vm522, %v581, -inf
        %583 = vmax.xlane.f32.xlu0 %v582
        %v584 = vpop.xlane.xlu0 %583
        %v585 = vsub.f32 %v581, %v584
        %v586 = vmul.f32 %v585, 1.442695
        %v587 = vpow.pop %v586
        %v588 = vsel %vm522, %v587, 0.0
        %589 = vadd.xlane.f32.xlu0 %v588
        %v590 = vpop.xlane.xlu0 %589
        %v591 = vrcp.pop %v590
        %v592 = vmul.f32 %v587, %v591
        %v593 = vpack.c.bf16 %v592, %v592
        %595 = vrot.lane.b32.xlu0 %v499, 64
        %v596 = vpop.permute.xlu0 %595
        %v598 = vsel %vm522, %v593, 0
        %v601 = vsel %vm538, %v596, 0
        %603 = vmatpush.bf16.msra.mxu0 0
        %604 = vmatpush.bf16.msra.mxu0 0
        %605 = vmatpush.bf16.msra.mxu0 0
        %606 = vmatpush.bf16.msra.mxu0 0
        %607 = vmatpush.bf16.msra.mxu0 0
        %608 = vmatpush.bf16.msra.mxu0 0
        %609 = vmatpush.bf16.msra.mxu0 0
        %610 = vmatpush.bf16.msra.mxu0 %v601
        %611 = vmatmul.bf16.gmra.mxu0 %v598
        %v612 = vpop.f32.mrf.mxu0
        %v613 = vadd.f32 0.0, %v612
        %v614 = vpop.f32.mrf.mxu0
        %615 = vdwg.mxu0
        %617 = vrot.lane.b32.xlu0 %v613, 64
        %v618 = vpop.permute.xlu0 %617
        %v620 = vsel %vm500, %v552, %v618
        %v621 = vpack.c.bf16 %v620, %v620
        %v622 = vld [vmem:[#allocation6] sm:$0xf]
        %v623 = vld [vmem:[#allocation6 + $0x4] sm:$0xf]
        %v624 = vld [vmem:[#allocation6 + $0x8] sm:$0xf]
        %v625 = vld [vmem:[#allocation6 + $0xc] sm:$0xf]
        %v626 = vld [vmem:[#allocation6 + $0x10] sm:$0xf]
        %v627 = vld [vmem:[#allocation6 + $0x14] sm:$0xf]
        %v628 = vld [vmem:[#allocation6 + $0x18] sm:$0xf]
        %v629 = vld [vmem:[#allocation6 + $0x1c] sm:$0xf]
        %v630 = vld [vmem:[#allocation6 + $0x20] sm:$0xf]
        %v631 = vld [vmem:[#allocation6 + $0x24] sm:$0xf]
        %v632 = vld [vmem:[#allocation6 + $0x28] sm:$0xf]
        %v633 = vld [vmem:[#allocation6 + $0x2c] sm:$0xf]
        %v634 = vld [vmem:[#allocation6 + $0x30] sm:$0xf]
        %v635 = vld [vmem:[#allocation6 + $0x34] sm:$0xf]
        %v636 = vld [vmem:[#allocation6 + $0x38] sm:$0xf]
        %v637 = vld [vmem:[#allocation6 + $0x3c] sm:$0xf]
        %v654 = vunpack.c.l.b16 %v622
        %v655 = vunpack.c.l.b16 %v623
        %v656 = vunpack.c.l.b16 %v624
        %v657 = vunpack.c.l.b16 %v625
        %v658 = vunpack.c.l.b16 %v626
        %v659 = vunpack.c.l.b16 %v627
        %v660 = vunpack.c.l.b16 %v628
        %v661 = vunpack.c.l.b16 %v629
        %v662 = vunpack.c.l.b16 %v630
        %v663 = vunpack.c.l.b16 %v631
        %v664 = vunpack.c.l.b16 %v632
        %v665 = vunpack.c.l.b16 %v633
        %v666 = vunpack.c.l.b16 %v634
        %v667 = vunpack.c.l.b16 %v635
        %v668 = vunpack.c.l.b16 %v636
        %v669 = vunpack.c.l.b16 %v637
        %v670 = vpack.c.b16 %v655, %v654
        %v671 = vpack.c.b16 %v657, %v656
        %v672 = vpack.c.b16 %v659, %v658
        %v673 = vpack.c.b16 %v661, %v660
        %v674 = vpack.c.b16 %v663, %v662
        %v675 = vpack.c.b16 %v665, %v664
        %v676 = vpack.c.b16 %v667, %v666
        %v677 = vpack.c.b16 %v669, %v668
        %686 = vmatpush.bf16.msra.mxu0 %v677
        %687 = vmatpush.bf16.msra.mxu0 %v676
        %688 = vmatpush.bf16.msra.mxu0 %v675
        %689 = vmatpush.bf16.msra.mxu0 %v674
        %690 = vmatpush.bf16.msra.mxu0 %v673
        %691 = vmatpush.bf16.msra.mxu0 %v672
        %692 = vmatpush.bf16.msra.mxu0 %v671
        %693 = vmatpush.bf16.msra.mxu0 %v670
        %694 = vmatmul.bf16.gmra.mxu0 %v621
        %v695 = vpop.f32.mrf.mxu0
        %v696 = vadd.f32 %v291, %v695
        %v697 = vpop.f32.mrf.mxu0
        %698 = vdwg.mxu0
        %699 = vadd.xlane.f32.xlu0 %v696
        %v700 = vpop.xlane.xlu0 %699
        %v701 = vrcp.pop 128.0
        %v702 = vmul.f32 128.0, %v701
        %v703 = vsub.f32 1.0, %v702
        %v704 = vmul.f32 %v701, %v703
        %v705 = vadd.f32 %v701, %v704
        %vm706 = vweird.f32 %v701
        %v707 = vsel %vm706, %v701, %v705
        %v708 = vmul.f32 %v700, %v707
        %v709 = vsub.f32 %v696, %v708
        %v710 = vmul.f32 %v709, %v709
        %711 = vadd.xlane.f32.xlu0 %v710
        %v712 = vpop.xlane.xlu0 %711
        %v713 = vmul.f32 %v712, %v707
        %v714 = vadd.f32 %v713, 1e-05
        %v715 = vrsqrt.pop %v714
        %v716 = vmul.f32 %v715, %v714
        %v717 = vmul.f32 %v716, %v715
        %v718 = vmul.f32 0.5, %v717
        %v719 = vsub.f32 1.5, %v718
        %v720 = vmul.f32 %v715, %v719
        %vm721 = vweird.f32 %v714
        %vm722 = vweird.f32 %v715
        %vm723 = vmor %vm721, %vm722
        %v724 = vsel %vm723, %v715, %v720
        %v725 = vmul.f32 %v709, %v724
        %v726 = vld [vmem:[%s3] sm:$0x1]
        %v728 = vperm.slane %v726, 0
        %v730 = vmul.f32 %v725, %v728
        %v731 = vld [vmem:[#allocation7] sm:$0x1]
        %v733 = vperm.slane %v731, 0
        %v735 = vadd.f32 %v730, %v733
        %736 = vst [vmem:[%s289] sm:$0xff] %v735
        %p737 = scmp.lt.s32.totalorder %s21, 1
        %s738 = scalar_select %p737, %s21, 1
        %s739 = smul.addr %s738, 8
        %s740 = scalar_lea.vmem %s5, %s739
        // Predicated region
        $region57: #{decoder_layer.2} parent=39 // pred_check
          %p741 = pneg %p149
        $region58: #{decoder_layer.2} parent=39 // pred_check_branch
          %743 = sbr.rel (%p741) target = $region60
        $region59: #{decoder_layer.2} parent=39 // pred_region
          _
        $region60: #{decoder_layer.2} parent=39 // pred_fallthru
          _
      $region40: #{decoder_layer.2} parent=5 // pred_fallthru
        _
      %p744 = scmp.le.s32.totalorder 2, %s16
      // Predicated region
      $region61: #{decoder_layer.2} parent=5 // pred_check
        %p745 = pneg %p744
      $region62: #{decoder_layer.2} parent=5 // pred_check_branch
        %747 = sbr.rel (%p745) target = $region64
      $region63: #{decoder_layer.2} parent=5 // pred_region
        %s748 = ssub.s32 %s16, 2
        // Predicated region
        $region65: #{decoder_layer.2} parent=63 // pred_check
          %p749 = pneg %p155
        $region66: #{decoder_layer.2} parent=63 // pred_check_branch
          %751 = sbr.rel (%p749) target = $region68
        $region67: #{decoder_layer.2} parent=63 // pred_region
          %p752 = scmp.lt.s32.totalorder %s22, 1
          %s753 = scalar_select %p752, %s22, 1
          %s754 = smul.addr %s753, 8
          %s755 = scalar_lea.vmem %s5, %s754
        $region68: #{decoder_layer.2} parent=63 // pred_fallthru
          _
      $region64: #{decoder_layer.2} parent=5 // pred_fallthru
        _
    $region6: #{decoder_layer.2} parent=1 // loop_footer
      %s20 = sadd.s32 1, %s16
    $region7: #{decoder_layer.2} parent=1 // loop_footer_branch
      %15 = sbr.rel target = $region3
    $region8: #{decoder_layer.2} parent=1 // loop_exit
      _
    %756 = vsyncpa [#allocation3], 1
    %s757 = scalar_lea.sflag [#allocation3], 1
    %758 = vsyncpa %s757, 1
    %759 = vsyncpa [#allocation5], 1
    %760 = vsyncpa [#allocation8], 1

// kernel: decoder_layer.3
$region0: #{decoder_layer.3}
  #allocation0 [shape = 'u32[]', space=smem, size = 0x4, offset = 0x4, fixed_abs, tag = 'smem constant byte address 0x4 - core index']
  #allocation1 [shape = 'u32[72,128]{1,0:T(1,128)}', space=vmem, size = 0x9000, scoped, tag = 'internal scratch']
  %s0 = inlined_call_operand.vmem [shape: f32[16,128], index: 0, kind: input, shape index: {}]
  %s1 = inlined_call_operand.hbm [shape: bf16[128,2048], index: 1, kind: input, shape index: {}]
  %s2 = inlined_call_operand.hbm [shape: bf16[2048,128], index: 2, kind: input, shape index: {}]
  %s3 = inlined_call_operand.vmem [shape: f32[1,128], index: 3, kind: input, shape index: {}]
  %s4 = inlined_call_operand.vmem [shape: f32[1,128], index: 4, kind: input, shape index: {}]
  %s5 = inlined_call_operand.hbm [shape: f32[16,128], index: 5, kind: output, shape index: {}]
  %s6 = sld [smem:[#allocation0]]
  $region38: #{decoder_layer.3} parent=0
    _
  %s8 = ssub.s32 1, %s6
  %s9 = scalar_select 0, %s8, %s6
  $region1: #{decoder_layer.3} parent=0
    #allocation2 [shape = 'u8[524288]{0}', space=vmem, size = 0x80000, scoped, tag = 'input window, operand 1, single buffered']
    #allocation3 [shape = 's32[1]{0}', space=sflag, size = 0x4, scoped, tag = 'scoped memory for decoder_layer.3']
    #allocation4 [shape = 's32[1]{0}', space=sflag, size = 0x4, scoped, tag = 'scoped memory for decoder_layer.3']
    #allocation5 [shape = 'u8[524288]{0}', space=vmem, size = 0x80000, scoped, tag = 'input window, operand 2, single buffered']
    #allocation6 [shape = 's32[1]{0}', space=sflag, size = 0x4, scoped, tag = 'scoped memory for decoder_layer.3']
    #allocation7 [shape = 'u8[8192]{0}', space=vmem, size = 0x2000, scoped, tag = 'output window, operand 0, single buffered']
    %10 = vsyncpa [#allocation3], 0
    %11 = vsyncpa [#allocation6], 0
    %12 = vsyncpa [#allocation4], 0
    // Predicated region
    $region2: #{decoder_layer.3} parent=1 // pred_check
      _
    $region3: #{decoder_layer.3} parent=1 // pred_check_branch
      %14 = sbr.rel (0) target = $region5
    $region4: #{decoder_layer.3} parent=1 // pred_region
      _
    $region5: #{decoder_layer.3} parent=1 // pred_fallthru
      _
    // Predicated region
    $region6: #{decoder_layer.3} parent=1 // pred_check
      _
    $region7: #{decoder_layer.3} parent=1 // pred_check_branch
      %16 = sbr.rel (0) target = $region9
    $region8: #{decoder_layer.3} parent=1 // pred_region
      %18 = vsyncadd [#allocation3], 0
      %s19 = sshll.u32 %s1, 4
      %s20 = int_to_ptr.hbm [resolvable:$true] %s19
      %s21 = sshll.u32 [#allocation2], 4
      %s22 = int_to_ptr.vmem [resolvable:$true] %s21
      %27 = dma.hbm_to_vmem [thread:$0]  %s20, 16384, %s22, [#allocation3], 1024, 1024, 64
    $region9: #{decoder_layer.3} parent=1 // pred_fallthru
      _
    // Predicated region
    $region10: #{decoder_layer.3} parent=1 // pred_check
      _
    $region11: #{decoder_layer.3} parent=1 // pred_check_branch
      %29 = sbr.rel (0) target = $region13
    $region12: #{decoder_layer.3} parent=1 // pred_region
      %31 = vsyncadd [#allocation6], 0
      %s32 = sshll.u32 %s2, 4
      %s33 = int_to_ptr.hbm [resolvable:$true] %s32
      %s34 = sshll.u32 [#allocation5], 4
      %s35 = int_to_ptr.vmem [resolvable:$true] %s34
      %40 = dma.hbm_to_vmem [thread:$0]  %s33, 16384, %s35, [#allocation6], 64, 64, 4
    $region13: #{decoder_layer.3} parent=1 // pred_fallthru
      _
    // Predicated region
    $region14: #{decoder_layer.3} parent=1 // pred_check
      _
    $region15: #{decoder_layer.3} parent=1 // pred_check_branch
      %42 = sbr.rel (0) target = $region17
    $region16: #{decoder_layer.3} parent=1 // pred_region
      _
    $region17: #{decoder_layer.3} parent=1 // pred_fallthru
      _
    // Predicated region
    $region18: #{decoder_layer.3} parent=1 // pred_check
      _
    $region19: #{decoder_layer.3} parent=1 // pred_check_branch
      %44 = sbr.rel (0) target = $region21
    $region20: #{decoder_layer.3} parent=1 // pred_region
      _
    $region21: #{decoder_layer.3} parent=1 // pred_fallthru
      _
    // Predicated region
    $region22: #{decoder_layer.3} parent=1 // pred_check
      _
    $region23: #{decoder_layer.3} parent=1 // pred_check_branch
      %46 = sbr.rel (0) target = $region25
    $region24: #{decoder_layer.3} parent=1 // pred_region
      %48 = dma.done [#allocation3], 16384
    $region25: #{decoder_layer.3} parent=1 // pred_fallthru
      _
    // Predicated region
    $region26: #{decoder_layer.3} parent=1 // pred_check
      _
    $region27: #{decoder_layer.3} parent=1 // pred_check_branch
      %50 = sbr.rel (0) target = $region29
    $region28: #{decoder_layer.3} parent=1 // pred_region
      %52 = dma.done [#allocation6], 16384
    $region29: #{decoder_layer.3} parent=1 // pred_fallthru
      _
    %v53 = vld [vmem:[%s0] sm:$0xff]
    %v54 = vld [vmem:[%s0 + $0x8] sm:$0xff]
    %v55 = vpack.c.bf16 %v54, %v53
    %v56 = vld [vmem:[#allocation2] sm:$0xff]
    %v57 = vld [vmem:[#allocation2 + $0x8] sm:$0xff]
    %v58 = vld [vmem:[#allocation2 + $0x10] sm:$0xff]
    %v59 = vld [vmem:[#allocation2 + $0x18] sm:$0xff]
    %v60 = vld [vmem:[#allocation2 + $0x20] sm:$0xff]
    %v61 = vld [vmem:[#allocation2 + $0x28] sm:$0xff]
    %v62 = vld [vmem:[#allocation2 + $0x30] sm:$0xff]
    %v63 = vld [vmem:[#allocation2 + $0x38] sm:$0xff]
    %v64 = vld [vmem:[#allocation2 + $0x40] sm:$0xff]
    %v65 = vld [vmem:[#allocation2 + $0x48] sm:$0xff]
    %v66 = vld [vmem:[#allocation2 + $0x50] sm:$0xff]
    %v67 = vld [vmem:[#allocation2 + $0x58] sm:$0xff]
    %v68 = vld [vmem:[#allocation2 + $0x60] sm:$0xff]
    %v69 = vld [vmem:[#allocation2 + $0x68] sm:$0xff]
    %v70 = vld [vmem:[#allocation2 + $0x70] sm:$0xff]
    %v71 = vld [vmem:[#allocation2 + $0x78] sm:$0xff]
    %v72 = vld [vmem:[#allocation2 + $0x80] sm:$0xff]
    %v73 = vld [vmem:[#allocation2 + $0x88] sm:$0xff]
    %v74 = vld [vmem:[#allocation2 + $0x90] sm:$0xff]
    %v75 = vld [vmem:[#allocation2 + $0x98] sm:$0xff]
    %v76 = vld [vmem:[#allocation2 + $0xa0] sm:$0xff]
    %v77 = vld [vmem:[#allocation2 + $0xa8] sm:$0xff]
    %v78 = vld [vmem:[#allocation2 + $0xb0] sm:$0xff]
    %v79 = vld [vmem:[#allocation2 + $0xb8] sm:$0xff]
    %v80 = vld [vmem:[#allocation2 + $0xc0] sm:$0xff]
    %v81 = vld [vmem:[#allocation2 + $0xc8] sm:$0xff]
    %v82 = vld [vmem:[#allocation2 + $0xd0] sm:$0xff]
    %v83 = vld [vmem:[#allocation2 + $0xd8] sm:$0xff]
    %v84 = vld [vmem:[#allocation2 + $0xe0] sm:$0xff]
    %v85 = vld [vmem:[#allocation2 + $0xe8] sm:$0xff]
    %v86 = vld [vmem:[#allocation2 + $0xf0] sm:$0xff]
    %v87 = vld [vmem:[#allocation2 + $0xf8] sm:$0xff]
    %v88 = vld [vmem:[#allocation2 + $0x100] sm:$0xff]
    %v89 = vld [vmem:[#allocation2 + $0x108] sm:$0xff]
    %v90 = vld [vmem:[#allocation2 + $0x110] sm:$0xff]
    %v91 = vld [vmem:[#allocation2 + $0x118] sm:$0xff]
    %v92 = vld [vmem:[#allocation2 + $0x120] sm:$0xff]
    %v93 = vld [vmem:[#allocation2 + $0x128] sm:$0xff]
    %v94 = vld [vmem:[#allocation2 + $0x130] sm:$0xff]
    %v95 = vld [vmem:[#allocation2 + $0x138] sm:$0xff]
    %v96 = vld [vmem:[#allocation2 + $0x140] sm:$0xff]
    %v97 = vld [vmem:[#allocation2 + $0x148] sm:$0xff]
    %v98 = vld [vmem:[#allocation2 + $0x150] sm:$0xff]
    %v99 = vld [vmem:[#allocation2 + $0x158] sm:$0xff]
    %v100 = vld [vmem:[#allocation2 + $0x160] sm:$0xff]
    %v101 = vld [vmem:[#allocation2 + $0x168] sm:$0xff]
    %v102 = vld [vmem:[#allocation2 + $0x170] sm:$0xff]
    %v103 = vld [vmem:[#allocation2 + $0x178] sm:$0xff]
    %v104 = vld [vmem:[#allocation2 + $0x180] sm:$0xff]
    %v105 = vld [vmem:[#allocation2 + $0x188] sm:$0xff]
    %v106 = vld [vmem:[#allocation2 + $0x190] sm:$0xff]
    %v107 = vld [vmem:[#allocation2 + $0x198] sm:$0xff]
    %v108 = vld [vmem:[#allocation2 + $0x1a0] sm:$0xff]
    %v109 = vld [vmem:[#allocation2 + $0x1a8] sm:$0xff]
    %v110 = vld [vmem:[#allocation2 + $0x1b0] sm:$0xff]
    %v111 = vld [vmem:[#allocation2 + $0x1b8] sm:$0xff]
    %v112 = vld [vmem:[#allocation2 + $0x1c0] sm:$0xff]
    %v113 = vld [vmem:[#allocation2 + $0x1c8] sm:$0xff]
    %v114 = vld [vmem:[#allocation2 + $0x1d0] sm:$0xff]
    %v115 = vld [vmem:[#allocation2 + $0x1d8] sm:$0xff]
    %v116 = vld [vmem:[#allocation2 + $0x1e0] sm:$0xff]
    %v117 = vld [vmem:[#allocation2 + $0x1e8] sm:$0xff]
    %v118 = vld [vmem:[#allocation2 + $0x1f0] sm:$0xff]
    %v119 = vld [vmem:[#allocation2 + $0x1f8] sm:$0xff]
    %v120 = vld [vmem:[#allocation2 + $0x200] sm:$0xff]
    %v121 = vld [vmem:[#allocation2 + $0x208] sm:$0xff]
    %v122 = vld [vmem:[#allocation2 + $0x210] sm:$0xff]
    %v123 = vld [vmem:[#allocation2 + $0x218] sm:$0xff]
    %v124 = vld [vmem:[#allocation2 + $0x220] sm:$0xff]
    %v125 = vld [vmem:[#allocation2 + $0x228] sm:$0xff]
    %v126 = vld [vmem:[#allocation2 + $0x230] sm:$0xff]
    %v127 = vld [vmem:[#allocation2 + $0x238] sm:$0xff]
    %v128 = vld [vmem:[#allocation2 + $0x240] sm:$0xff]
    %v129 = vld [vmem:[#allocation2 + $0x248] sm:$0xff]
    %v130 = vld [vmem:[#allocation2 + $0x250] sm:$0xff]
    %v131 = vld [vmem:[#allocation2 + $0x258] sm:$0xff]
    %v132 = vld [vmem:[#allocation2 + $0x260] sm:$0xff]
    %v133 = vld [vmem:[#allocation2 + $0x268] sm:$0xff]
    %v134 = vld [vmem:[#allocation2 + $0x270] sm:$0xff]
    %v135 = vld [vmem:[#allocation2 + $0x278] sm:$0xff]
    %v136 = vld [vmem:[#allocation2 + $0x280] sm:$0xff]
    %v137 = vld [vmem:[#allocation2 + $0x288] sm:$0xff]
    %v138 = vld [vmem:[#allocation2 + $0x290] sm:$0xff]
    %v139 = vld [vmem:[#allocation2 + $0x298] sm:$0xff]
    %v140 = vld [vmem:[#allocation2 + $0x2a0] sm:$0xff]
    %v141 = vld [vmem:[#allocation2 + $0x2a8] sm:$0xff]
    %v142 = vld [vmem:[#allocation2 + $0x2b0] sm:$0xff]
    %v143 = vld [vmem:[#allocation2 + $0x2b8] sm:$0xff]
    %v144 = vld [vmem:[#allocation2 + $0x2c0] sm:$0xff]
    %v145 = vld [vmem:[#allocation2 + $0x2c8] sm:$0xff]
    %v146 = vld [vmem:[#allocation2 + $0x2d0] sm:$0xff]
    %v147 = vld [vmem:[#allocation2 + $0x2d8] sm:$0xff]
    %v148 = vld [vmem:[#allocation2 + $0x2e0] sm:$0xff]
    %v149 = vld [vmem:[#allocation2 + $0x2e8] sm:$0xff]
    %v150 = vld [vmem:[#allocation2 + $0x2f0] sm:$0xff]
    %v151 = vld [vmem:[#allocation2 + $0x2f8] sm:$0xff]
    %v152 = vld [vmem:[#allocation2 + $0x300] sm:$0xff]
    %v153 = vld [vmem:[#allocation2 + $0x308] sm:$0xff]
    %v154 = vld [vmem:[#allocation2 + $0x310] sm:$0xff]
    %v155 = vld [vmem:[#allocation2 + $0x318] sm:$0xff]
    %v156 = vld [vmem:[#allocation2 + $0x320] sm:$0xff]
    %v157 = vld [vmem:[#allocation2 + $0x328] sm:$0xff]
    %v158 = vld [vmem:[#allocation2 + $0x330] sm:$0xff]
    %v159 = vld [vmem:[#allocation2 + $0x338] sm:$0xff]
    %v160 = vld [vmem:[#allocation2 + $0x340] sm:$0xff]
    %v161 = vld [vmem:[#allocation2 + $0x348] sm:$0xff]
    %v162 = vld [vmem:[#allocation2 + $0x350] sm:$0xff]
    %v163 = vld [vmem:[#allocation2 + $0x358] sm:$0xff]
    %v164 = vld [vmem:[#allocation2 + $0x360] sm:$0xff]
    %v165 = vld [vmem:[#allocation2 + $0x368] sm:$0xff]
    %v166 = vld [vmem:[#allocation2 + $0x370] sm:$0xff]
    %v167 = vld [vmem:[#allocation2 + $0x378] sm:$0xff]
    %v168 = vld [vmem:[#allocation2 + $0x380] sm:$0xff]
    %v169 = vld [vmem:[#allocation2 + $0x388] sm:$0xff]
    %v170 = vld [vmem:[#allocation2 + $0x390] sm:$0xff]
    %v171 = vld [vmem:[#allocation2 + $0x398] sm:$0xff]
    %v172 = vld [vmem:[#allocation2 + $0x3a0] sm:$0xff]
    %v173 = vld [vmem:[#allocation2 + $0x3a8] sm:$0xff]
    %v174 = vld [vmem:[#allocation2 + $0x3b0] sm:$0xff]
    %v175 = vld [vmem:[#allocation2 + $0x3b8] sm:$0xff]
    %v176 = vld [vmem:[#allocation2 + $0x3c0] sm:$0xff]
    %v177 = vld [vmem:[#allocation2 + $0x3c8] sm:$0xff]
    %v178 = vld [vmem:[#allocation2 + $0x3d0] sm:$0xff]
    %v179 = vld [vmem:[#allocation2 + $0x3d8] sm:$0xff]
    %v180 = vld [vmem:[#allocation2 + $0x3e0] sm:$0xff]
    %v181 = vld [vmem:[#allocation2 + $0x3e8] sm:$0xff]
    %v182 = vld [vmem:[#allocation2 + $0x3f0] sm:$0xff]
    %v183 = vld [vmem:[#allocation2 + $0x3f8] sm:$0xff]
    %v312 = vunpack.c.l.b16 %v56
    %v313 = vunpack.c.h.b16 %v56
    %v314 = vunpack.c.l.b16 %v57
    %v315 = vunpack.c.h.b16 %v57
    %v316 = vunpack.c.l.b16 %v58
    %v317 = vunpack.c.h.b16 %v58
    %v318 = vunpack.c.l.b16 %v59
    %v319 = vunpack.c.h.b16 %v59
    %v320 = vunpack.c.l.b16 %v60
    %v321 = vunpack.c.h.b16 %v60
    %v322 = vunpack.c.l.b16 %v61
    %v323 = vunpack.c.h.b16 %v61
    %v324 = vunpack.c.l.b16 %v62
    %v325 = vunpack.c.h.b16 %v62
    %v326 = vunpack.c.l.b16 %v63
    %v327 = vunpack.c.h.b16 %v63
    %v328 = vunpack.c.l.b16 %v64
    %v329 = vunpack.c.h.b16 %v64
    %v330 = vunpack.c.l.b16 %v65
    %v331 = vunpack.c.h.b16 %v65
    %v332 = vunpack.c.l.b16 %v66
    %v333 = vunpack.c.h.b16 %v66
    %v334 = vunpack.c.l.b16 %v67
    %v335 = vunpack.c.h.b16 %v67
    %v336 = vunpack.c.l.b16 %v68
    %v337 = vunpack.c.h.b16 %v68
    %v338 = vunpack.c.l.b16 %v69
    %v339 = vunpack.c.h.b16 %v69
    %v340 = vunpack.c.l.b16 %v70
    %v341 = vunpack.c.h.b16 %v70
    %v342 = vunpack.c.l.b16 %v71
    %v343 = vunpack.c.h.b16 %v71
    %v344 = vunpack.c.l.b16 %v72
    %v345 = vunpack.c.h.b16 %v72
    %v346 = vunpack.c.l.b16 %v73
    %v347 = vunpack.c.h.b16 %v73
    %v348 = vunpack.c.l.b16 %v74
    %v349 = vunpack.c.h.b16 %v74
    %v350 = vunpack.c.l.b16 %v75
    %v351 = vunpack.c.h.b16 %v75
    %v352 = vunpack.c.l.b16 %v76
    %v353 = vunpack.c.h.b16 %v76
    %v354 = vunpack.c.l.b16 %v77
    %v355 = vunpack.c.h.b16 %v77
    %v356 = vunpack.c.l.b16 %v78
    %v357 = vunpack.c.h.b16 %v78
    %v358 = vunpack.c.l.b16 %v79
    %v359 = vunpack.c.h.b16 %v79
    %v360 = vunpack.c.l.b16 %v80
    %v361 = vunpack.c.h.b16 %v80
    %v362 = vunpack.c.l.b16 %v81
    %v363 = vunpack.c.h.b16 %v81
    %v364 = vunpack.c.l.b16 %v82
    %v365 = vunpack.c.h.b16 %v82
    %v366 = vunpack.c.l.b16 %v83
    %v367 = vunpack.c.h.b16 %v83
    %v368 = vunpack.c.l.b16 %v84
    %v369 = vunpack.c.h.b16 %v84
    %v370 = vunpack.c.l.b16 %v85
    %v371 = vunpack.c.h.b16 %v85
    %v372 = vunpack.c.l.b16 %v86
    %v373 = vunpack.c.h.b16 %v86
    %v374 = vunpack.c.l.b16 %v87
    %v375 = vunpack.c.h.b16 %v87
    %v376 = vunpack.c.l.b16 %v88
    %v377 = vunpack.c.h.b16 %v88
    %v378 = vunpack.c.l.b16 %v89
    %v379 = vunpack.c.h.b16 %v89
    %v380 = vunpack.c.l.b16 %v90
    %v381 = vunpack.c.h.b16 %v90
    %v382 = vunpack.c.l.b16 %v91
    %v383 = vunpack.c.h.b16 %v91
    %v384 = vunpack.c.l.b16 %v92
    %v385 = vunpack.c.h.b16 %v92
    %v386 = vunpack.c.l.b16 %v93
    %v387 = vunpack.c.h.b16 %v93
    %v388 = vunpack.c.l.b16 %v94
    %v389 = vunpack.c.h.b16 %v94
    %v390 = vunpack.c.l.b16 %v95
    %v391 = vunpack.c.h.b16 %v95
    %v392 = vunpack.c.l.b16 %v96
    %v393 = vunpack.c.h.b16 %v96
    %v394 = vunpack.c.l.b16 %v97
    %v395 = vunpack.c.h.b16 %v97
    %v396 = vunpack.c.l.b16 %v98
    %v397 = vunpack.c.h.b16 %v98
    %v398 = vunpack.c.l.b16 %v99
    %v399 = vunpack.c.h.b16 %v99
    %v400 = vunpack.c.l.b16 %v100
    %v401 = vunpack.c.h.b16 %v100
    %v402 = vunpack.c.l.b16 %v101
    %v403 = vunpack.c.h.b16 %v101
    %v404 = vunpack.c.l.b16 %v102
    %v405 = vunpack.c.h.b16 %v102
    %v406 = vunpack.c.l.b16 %v103
    %v407 = vunpack.c.h.b16 %v103
    %v408 = vunpack.c.l.b16 %v104
    %v409 = vunpack.c.h.b16 %v104
    %v410 = vunpack.c.l.b16 %v105
    %v411 = vunpack.c.h.b16 %v105
    %v412 = vunpack.c.l.b16 %v106
    %v413 = vunpack.c.h.b16 %v106
    %v414 = vunpack.c.l.b16 %v107
    %v415 = vunpack.c.h.b16 %v107
    %v416 = vunpack.c.l.b16 %v108
    %v417 = vunpack.c.h.b16 %v108
    %v418 = vunpack.c.l.b16 %v109
    %v419 = vunpack.c.h.b16 %v109
    %v420 = vunpack.c.l.b16 %v110
    %v421 = vunpack.c.h.b16 %v110
    %v422 = vunpack.c.l.b16 %v111
    %v423 = vunpack.c.h.b16 %v111
    %v424 = vunpack.c.l.b16 %v112
    %v425 = vunpack.c.h.b16 %v112
    %v426 = vunpack.c.l.b16 %v113
    %v427 = vunpack.c.h.b16 %v113
    %v428 = vunpack.c.l.b16 %v114
    %v429 = vunpack.c.h.b16 %v114
    %v430 = vunpack.c.l.b16 %v115
    %v431 = vunpack.c.h.b16 %v115
    %v432 = vunpack.c.l.b16 %v116
    %v433 = vunpack.c.h.b16 %v116
    %v434 = vunpack.c.l.b16 %v117
    %v435 = vunpack.c.h.b16 %v117
    %v436 = vunpack.c.l.b16 %v118
    %v437 = vunpack.c.h.b16 %v118
    %v438 = vunpack.c.l.b16 %v119
    %v439 = vunpack.c.h.b16 %v119
    %v440 = vunpack.c.l.b16 %v120
    %v441 = vunpack.c.h.b16 %v120
    %v442 = vunpack.c.l.b16 %v121
    %v443 = vunpack.c.h.b16 %v121
    %v444 = vunpack.c.l.b16 %v122
    %v445 = vunpack.c.h.b16 %v122
    %v446 = vunpack.c.l.b16 %v123
    %v447 = vunpack.c.h.b16 %v123
    %v448 = vunpack.c.l.b16 %v124
    %v449 = vunpack.c.h.b16 %v124
    %v450 = vunpack.c.l.b16 %v125
    %v451 = vunpack.c.h.b16 %v125
    %v452 = vunpack.c.l.b16 %v126
    %v453 = vunpack.c.h.b16 %v126
    %v454 = vunpack.c.l.b16 %v127
    %v455 = vunpack.c.h.b16 %v127
    %v456 = vunpack.c.l.b16 %v128
    %v457 = vunpack.c.h.b16 %v128
    %v458 = vunpack.c.l.b16 %v129
    %v459 = vunpack.c.h.b16 %v129
    %v460 = vunpack.c.l.b16 %v130
    %v461 = vunpack.c.h.b16 %v130
    %v462 = vunpack.c.l.b16 %v131
    %v463 = vunpack.c.h.b16 %v131
    %v464 = vunpack.c.l.b16 %v132
    %v465 = vunpack.c.h.b16 %v132
    %v466 = vunpack.c.l.b16 %v133
    %v467 = vunpack.c.h.b16 %v133
    %v468 = vunpack.c.l.b16 %v134
    %v469 = vunpack.c.h.b16 %v134
    %v470 = vunpack.c.l.b16 %v135
    %v471 = vunpack.c.h.b16 %v135
    %v472 = vunpack.c.l.b16 %v136
    %v473 = vunpack.c.h.b16 %v136
    %v474 = vunpack.c.l.b16 %v137
    %v475 = vunpack.c.h.b16 %v137
    %v476 = vunpack.c.l.b16 %v138
    %v477 = vunpack.c.h.b16 %v138
    %v478 = vunpack.c.l.b16 %v139
    %v479 = vunpack.c.h.b16 %v139
    %v480 = vunpack.c.l.b16 %v140
    %v481 = vunpack.c.h.b16 %v140
    %v482 = vunpack.c.l.b16 %v141
    %v483 = vunpack.c.h.b16 %v141
    %v484 = vunpack.c.l.b16 %v142
    %v485 = vunpack.c.h.b16 %v142
    %v486 = vunpack.c.l.b16 %v143
    %v487 = vunpack.c.h.b16 %v143
    %v488 = vunpack.c.l.b16 %v144
    %v489 = vunpack.c.h.b16 %v144
    %v490 = vunpack.c.l.b16 %v145
    %v491 = vunpack.c.h.b16 %v145
    %v492 = vunpack.c.l.b16 %v146
    %v493 = vunpack.c.h.b16 %v146
    %v494 = vunpack.c.l.b16 %v147
    %v495 = vunpack.c.h.b16 %v147
    %v496 = vunpack.c.l.b16 %v148
    %v497 = vunpack.c.h.b16 %v148
    %v498 = vunpack.c.l.b16 %v149
    %v499 = vunpack.c.h.b16 %v149
    %v500 = vunpack.c.l.b16 %v150
    %v501 = vunpack.c.h.b16 %v150
    %v502 = vunpack.c.l.b16 %v151
    %v503 = vunpack.c.h.b16 %v151
    %v504 = vunpack.c.l.b16 %v152
    %v505 = vunpack.c.h.b16 %v152
    %v506 = vunpack.c.l.b16 %v153
    %v507 = vunpack.c.h.b16 %v153
    %v508 = vunpack.c.l.b16 %v154
    %v509 = vunpack.c.h.b16 %v154
    %v510 = vunpack.c.l.b16 %v155
    %v511 = vunpack.c.h.b16 %v155
    %v512 = vunpack.c.l.b16 %v156
    %v513 = vunpack.c.h.b16 %v156
    %v514 = vunpack.c.l.b16 %v157
    %v515 = vunpack.c.h.b16 %v157
    %v516 = vunpack.c.l.b16 %v158
    %v517 = vunpack.c.h.b16 %v158
    %v518 = vunpack.c.l.b16 %v159
    %v519 = vunpack.c.h.b16 %v159
    %v520 = vunpack.c.l.b16 %v160
    %v521 = vunpack.c.h.b16 %v160
    %v522 = vunpack.c.l.b16 %v161
    %v523 = vunpack.c.h.b16 %v161
    %v524 = vunpack.c.l.b16 %v162
    %v525 = vunpack.c.h.b16 %v162
    %v526 = vunpack.c.l.b16 %v163
    %v527 = vunpack.c.h.b16 %v163
    %v528 = vunpack.c.l.b16 %v164
    %v529 = vunpack.c.h.b16 %v164
    %v530 = vunpack.c.l.b16 %v165
    %v531 = vunpack.c.h.b16 %v165
    %v532 = vunpack.c.l.b16 %v166
    %v533 = vunpack.c.h.b16 %v166
    %v534 = vunpack.c.l.b16 %v167
    %v535 = vunpack.c.h.b16 %v167
    %v536 = vunpack.c.l.b16 %v168
    %v537 = vunpack.c.h.b16 %v168
    %v538 = vunpack.c.l.b16 %v169
    %v539 = vunpack.c.h.b16 %v169
    %v540 = vunpack.c.l.b16 %v170
    %v541 = vunpack.c.h.b16 %v170
    %v542 = vunpack.c.l.b16 %v171
    %v543 = vunpack.c.h.b16 %v171
    %v544 = vunpack.c.l.b16 %v172
    %v545 = vunpack.c.h.b16 %v172
    %v546 = vunpack.c.l.b16 %v173
    %v547 = vunpack.c.h.b16 %v173
    %v548 = vunpack.c.l.b16 %v174
    %v549 = vunpack.c.h.b16 %v174
    %v550 = vunpack.c.l.b16 %v175
    %v551 = vunpack.c.h.b16 %v175
    %v552 = vunpack.c.l.b16 %v176
    %v553 = vunpack.c.h.b16 %v176
    %v554 = vunpack.c.l.b16 %v177
    %v555 = vunpack.c.h.b16 %v177
    %v556 = vunpack.c.l.b16 %v178
    %v557 = vunpack.c.h.b16 %v178
    %v558 = vunpack.c.l.b16 %v179
    %v559 = vunpack.c.h.b16 %v179
    %v560 = vunpack.c.l.b16 %v180
    %v561 = vunpack.c.h.b16 %v180
    %v562 = vunpack.c.l.b16 %v181
    %v563 = vunpack.c.h.b16 %v181
    %v564 = vunpack.c.l.b16 %v182
    %v565 = vunpack.c.h.b16 %v182
    %v566 = vunpack.c.l.b16 %v183
    %v567 = vunpack.c.h.b16 %v183
    %v568 = vpack.c.b16 %v328, %v312
    %v569 = vpack.c.b16 %v329, %v313
    %v570 = vpack.c.b16 %v330, %v314
    %v571 = vpack.c.b16 %v331, %v315
    %v572 = vpack.c.b16 %v332, %v316
    %v573 = vpack.c.b16 %v333, %v317
    %v574 = vpack.c.b16 %v334, %v318
    %v575 = vpack.c.b16 %v335, %v319
    %v576 = vpack.c.b16 %v336, %v320
    %v577 = vpack.c.b16 %v337, %v321
    %v578 = vpack.c.b16 %v338, %v322
    %v579 = vpack.c.b16 %v339, %v323
    %v580 = vpack.c.b16 %v340, %v324
    %v581 = vpack.c.b16 %v341, %v325
    %v582 = vpack.c.b16 %v342, %v326
    %v583 = vpack.c.b16 %v343, %v327
    %v584 = vpack.c.b16 %v360, %v344
    %v585 = vpack.c.b16 %v361, %v345
    %v586 = vpack.c.b16 %v362, %v346
    %v587 = vpack.c.b16 %v363, %v347
    %v588 = vpack.c.b16 %v364, %v348
    %v589 = vpack.c.b16 %v365, %v349
    %v590 = vpack.c.b16 %v366, %v350
    %v591 = vpack.c.b16 %v367, %v351
    %v592 = vpack.c.b16 %v368, %v352
    %v593 = vpack.c.b16 %v369, %v353
    %v594 = vpack.c.b16 %v370, %v354
    %v595 = vpack.c.b16 %v371, %v355
    %v596 = vpack.c.b16 %v372, %v356
    %v597 = vpack.c.b16 %v373, %v357
    %v598 = vpack.c.b16 %v374, %v358
    %v599 = vpack.c.b16 %v375, %v359
    %v600 = vpack.c.b16 %v392, %v376
    %v601 = vpack.c.b16 %v393, %v377
    %v602 = vpack.c.b16 %v394, %v378
    %v603 = vpack.c.b16 %v395, %v379
    %v604 = vpack.c.b16 %v396, %v380
    %v605 = vpack.c.b16 %v397, %v381
    %v606 = vpack.c.b16 %v398, %v382
    %v607 = vpack.c.b16 %v399, %v383
    %v608 = vpack.c.b16 %v400, %v384
    %v609 = vpack.c.b16 %v401, %v385
    %v610 = vpack.c.b16 %v402, %v386
    %v611 = vpack.c.b16 %v403, %v387
    %v612 = vpack.c.b16 %v404, %v388
    %v613 = vpack.c.b16 %v405, %v389
    %v614 = vpack.c.b16 %v406, %v390
    %v615 = vpack.c.b16 %v407, %v391
    %v616 = vpack.c.b16 %v424, %v408
    %v617 = vpack.c.b16 %v425, %v409
    %v618 = vpack.c.b16 %v426, %v410
    %v619 = vpack.c.b16 %v427, %v411
    %v620 = vpack.c.b16 %v428, %v412
    %v621 = vpack.c.b16 %v429, %v413
    %v622 = vpack.c.b16 %v430, %v414
    %v623 = vpack.c.b16 %v431, %v415
    %v624 = vpack.c.b16 %v432, %v416
    %v625 = vpack.c.b16 %v433, %v417
    %v626 = vpack.c.b16 %v434, %v418
    %v627 = vpack.c.b16 %v435, %v419
    %v628 = vpack.c.b16 %v436, %v420
    %v629 = vpack.c.b16 %v437, %v421
    %v630 = vpack.c.b16 %v438, %v422
    %v631 = vpack.c.b16 %v439, %v423
    %v632 = vpack.c.b16 %v456, %v440
    %v633 = vpack.c.b16 %v457, %v441
    %v634 = vpack.c.b16 %v458, %v442
    %v635 = vpack.c.b16 %v459, %v443
    %v636 = vpack.c.b16 %v460, %v444
    %v637 = vpack.c.b16 %v461, %v445
    %v638 = vpack.c.b16 %v462, %v446
    %v639 = vpack.c.b16 %v463, %v447
    %v640 = vpack.c.b16 %v464, %v448
    %v641 = vpack.c.b16 %v465, %v449
    %v642 = vpack.c.b16 %v466, %v450
    %v643 = vpack.c.b16 %v467, %v451
    %v644 = vpack.c.b16 %v468, %v452
    %v645 = vpack.c.b16 %v469, %v453
    %v646 = vpack.c.b16 %v470, %v454
    %v647 = vpack.c.b16 %v471, %v455
    %v648 = vpack.c.b16 %v488, %v472
    %v649 = vpack.c.b16 %v489, %v473
    %v650 = vpack.c.b16 %v490, %v474
    %v651 = vpack.c.b16 %v491, %v475
    %v652 = vpack.c.b16 %v492, %v476
    %v653 = vpack.c.b16 %v493, %v477
    %v654 = vpack.c.b16 %v494, %v478
    %v655 = vpack.c.b16 %v495, %v479
    %v656 = vpack.c.b16 %v496, %v480
    %v657 = vpack.c.b16 %v497, %v481
    %v658 = vpack.c.b16 %v498, %v482
    %v659 = vpack.c.b16 %v499, %v483
    %v660 = vpack.c.b16 %v500, %v484
    %v661 = vpack.c.b16 %v501, %v485
    %v662 = vpack.c.b16 %v502, %v486
    %v663 = vpack.c.b16 %v503, %v487
    %v664 = vpack.c.b16 %v520, %v504
    %v665 = vpack.c.b16 %v521, %v505
    %v666 = vpack.c.b16 %v522, %v506
    %v667 = vpack.c.b16 %v523, %v507
    %v668 = vpack.c.b16 %v524, %v508
    %v669 = vpack.c.b16 %v525, %v509
    %v670 = vpack.c.b16 %v526, %v510
    %v671 = vpack.c.b16 %v527, %v511
    %v672 = vpack.c.b16 %v528, %v512
    %v673 = vpack.c.b16 %v529, %v513
    %v674 = vpack.c.b16 %v530, %v514
    %v675 = vpack.c.b16 %v531, %v515
    %v676 = vpack.c.b16 %v532, %v516
    %v677 = vpack.c.b16 %v533, %v517
    %v678 = vpack.c.b16 %v534, %v518
    %v679 = vpack.c.b16 %v535, %v519
    %v680 = vpack.c.b16 %v552, %v536
    %v681 = vpack.c.b16 %v553, %v537
    %v682 = vpack.c.b16 %v554, %v538
    %v683 = vpack.c.b16 %v555, %v539
    %v684 = vpack.c.b16 %v556, %v540
    %v685 = vpack.c.b16 %v557, %v541
    %v686 = vpack.c.b16 %v558, %v542
    %v687 = vpack.c.b16 %v559, %v543
    %v688 = vpack.c.b16 %v560, %v544
    %v689 = vpack.c.b16 %v561, %v545
    %v690 = vpack.c.b16 %v562, %v546
    %v691 = vpack.c.b16 %v563, %v547
    %v692 = vpack.c.b16 %v564, %v548
    %v693 = vpack.c.b16 %v565, %v549
    %v694 = vpack.c.b16 %v566, %v550
    %v695 = vpack.c.b16 %v567, %v551
    %824 = vmatpush.bf16.msra.mxu0 %v680
    %825 = vmatpush.bf16.msra.mxu0 %v664
    %826 = vmatpush.bf16.msra.mxu0 %v648
    %827 = vmatpush.bf16.msra.mxu0 %v632
    %828 = vmatpush.bf16.msra.mxu0 %v616
    %829 = vmatpush.bf16.msra.mxu0 %v600
    %830 = vmatpush.bf16.msra.mxu0 %v584
    %831 = vmatpush.bf16.msra.mxu0 %v568
    %832 = vmatmul.bf16.gmra.mxu0 %v55
    %v833 = vpop.f32.mrf.mxu0
    %v834 = vadd.f32 0.0, %v833
    %v835 = vpop.f32.mrf.mxu0
    %v836 = vadd.f32 0.0, %v835
    %837 = vdwg.mxu0
    %838 = vmatpush.bf16.msra.mxu0 %v681
    %839 = vmatpush.bf16.msra.mxu0 %v665
    %840 = vmatpush.bf16.msra.mxu0 %v649
    %841 = vmatpush.bf16.msra.mxu0 %v633
    %842 = vmatpush.bf16.msra.mxu0 %v617
    %843 = vmatpush.bf16.msra.mxu0 %v601
    %844 = vmatpush.bf16.msra.mxu0 %v585
    %845 = vmatpush.bf16.msra.mxu0 %v569
    %846 = vmatmul.bf16.gmra.mxu0 %v55
    %v847 = vpop.f32.mrf.mxu0
    %v848 = vadd.f32 0.0, %v847
    %v849 = vpop.f32.mrf.mxu0
    %v850 = vadd.f32 0.0, %v849
    %851 = vdwg.mxu0
    %852 = vmatpush.bf16.msra.mxu0 %v682
    %853 = vmatpush.bf16.msra.mxu0 %v666
    %854 = vmatpush.bf16.msra.mxu0 %v650
    %855 = vmatpush.bf16.msra.mxu0 %v634
    %856 = vmatpush.bf16.msra.mxu0 %v618
    %857 = vmatpush.bf16.msra.mxu0 %v602
    %858 = vmatpush.bf16.msra.mxu0 %v586
    %859 = vmatpush.bf16.msra.mxu0 %v570
    %860 = vmatmul.bf16.gmra.mxu0 %v55
    %v861 = vpop.f32.mrf.mxu0
    %v862 = vadd.f32 0.0, %v861
    %v863 = vpop.f32.mrf.mxu0
    %v864 = vadd.f32 0.0, %v863
    %865 = vdwg.mxu0
    %866 = vmatpush.bf16.msra.mxu0 %v683
    %867 = vmatpush.bf16.msra.mxu0 %v667
    %868 = vmatpush.bf16.msra.mxu0 %v651
    %869 = vmatpush.bf16.msra.mxu0 %v635
    %870 = vmatpush.bf16.msra.mxu0 %v619
    %871 = vmatpush.bf16.msra.mxu0 %v603
    %872 = vmatpush.bf16.msra.mxu0 %v587
    %873 = vmatpush.bf16.msra.mxu0 %v571
    %874 = vmatmul.bf16.gmra.mxu0 %v55
    %v875 = vpop.f32.mrf.mxu0
    %v876 = vadd.f32 0.0, %v875
    %v877 = vpop.f32.mrf.mxu0
    %v878 = vadd.f32 0.0, %v877
    %879 = vdwg.mxu0
    %880 = vmatpush.bf16.msra.mxu0 %v684
    %881 = vmatpush.bf16.msra.mxu0 %v668
    %882 = vmatpush.bf16.msra.mxu0 %v652
    %883 = vmatpush.bf16.msra.mxu0 %v636
    %884 = vmatpush.bf16.msra.mxu0 %v620
    %885 = vmatpush.bf16.msra.mxu0 %v604
    %886 = vmatpush.bf16.msra.mxu0 %v588
    %887 = vmatpush.bf16.msra.mxu0 %v572
    %888 = vmatmul.bf16.gmra.mxu0 %v55
    %v889 = vpop.f32.mrf.mxu0
    %v890 = vadd.f32 0.0, %v889
    %v891 = vpop.f32.mrf.mxu0
    %v892 = vadd.f32 0.0, %v891
    %893 = vdwg.mxu0
    %894 = vmatpush.bf16.msra.mxu0 %v685
    %895 = vmatpush.bf16.msra.mxu0 %v669
    %896 = vmatpush.bf16.msra.mxu0 %v653
    %897 = vmatpush.bf16.msra.mxu0 %v637
    %898 = vmatpush.bf16.msra.mxu0 %v621
    %899 = vmatpush.bf16.msra.mxu0 %v605
    %900 = vmatpush.bf16.msra.mxu0 %v589
    %901 = vmatpush.bf16.msra.mxu0 %v573
    %902 = vmatmul.bf16.gmra.mxu0 %v55
    %v903 = vpop.f32.mrf.mxu0
    %v904 = vadd.f32 0.0, %v903
    %v905 = vpop.f32.mrf.mxu0
    %v906 = vadd.f32 0.0, %v905
    %907 = vdwg.mxu0
    %908 = vmatpush.bf16.msra.mxu0 %v686
    %909 = vmatpush.bf16.msra.mxu0 %v670
    %910 = vmatpush.bf16.msra.mxu0 %v654
    %911 = vmatpush.bf16.msra.mxu0 %v638
    %912 = vmatpush.bf16.msra.mxu0 %v622
    %913 = vmatpush.bf16.msra.mxu0 %v606
    %914 = vmatpush.bf16.msra.mxu0 %v590
    %915 = vmatpush.bf16.msra.mxu0 %v574
    %916 = vmatmul.bf16.gmra.mxu0 %v55
    %v917 = vpop.f32.mrf.mxu0
    %v918 = vadd.f32 0.0, %v917
    %v919 = vpop.f32.mrf.mxu0
    %v920 = vadd.f32 0.0, %v919
    %921 = vdwg.mxu0
    %922 = vmatpush.bf16.msra.mxu0 %v687
    %923 = vmatpush.bf16.msra.mxu0 %v671
    %924 = vmatpush.bf16.msra.mxu0 %v655
    %925 = vmatpush.bf16.msra.mxu0 %v639
    %926 = vmatpush.bf16.msra.mxu0 %v623
    %927 = vmatpush.bf16.msra.mxu0 %v607
    %928 = vmatpush.bf16.msra.mxu0 %v591
    %929 = vmatpush.bf16.msra.mxu0 %v575
    %930 = vmatmul.bf16.gmra.mxu0 %v55
    %v931 = vpop.f32.mrf.mxu0
    %v932 = vadd.f32 0.0, %v931
    %v933 = vpop.f32.mrf.mxu0
    %v934 = vadd.f32 0.0, %v933
    %935 = vdwg.mxu0
    %936 = vmatpush.bf16.msra.mxu0 %v688
    %937 = vmatpush.bf16.msra.mxu0 %v672
    %938 = vmatpush.bf16.msra.mxu0 %v656
    %939 = vmatpush.bf16.msra.mxu0 %v640
    %940 = vmatpush.bf16.msra.mxu0 %v624
    %941 = vmatpush.bf16.msra.mxu0 %v608
    %942 = vmatpush.bf16.msra.mxu0 %v592
    %943 = vmatpush.bf16.msra.mxu0 %v576
    %944 = vmatmul.bf16.gmra.mxu0 %v55
    %v945 = vpop.f32.mrf.mxu0
    %v946 = vadd.f32 0.0, %v945
    %v947 = vpop.f32.mrf.mxu0
    %v948 = vadd.f32 0.0, %v947
    %949 = vdwg.mxu0
    %950 = vmatpush.bf16.msra.mxu0 %v689
    %951 = vmatpush.bf16.msra.mxu0 %v673
    %952 = vmatpush.bf16.msra.mxu0 %v657
    %953 = vmatpush.bf16.msra.mxu0 %v641
    %954 = vmatpush.bf16.msra.mxu0 %v625
    %955 = vmatpush.bf16.msra.mxu0 %v609
    %956 = vmatpush.bf16.msra.mxu0 %v593
    %957 = vmatpush.bf16.msra.mxu0 %v577
    %958 = vmatmul.bf16.gmra.mxu0 %v55
    %v959 = vpop.f32.mrf.mxu0
    %v960 = vadd.f32 0.0, %v959
    %v961 = vpop.f32.mrf.mxu0
    %v962 = vadd.f32 0.0, %v961
    %963 = vdwg.mxu0
    %964 = vmatpush.bf16.msra.mxu0 %v690
    %965 = vmatpush.bf16.msra.mxu0 %v674
    %966 = vmatpush.bf16.msra.mxu0 %v658
    %967 = vmatpush.bf16.msra.mxu0 %v642
    %968 = vmatpush.bf16.msra.mxu0 %v626
    %969 = vmatpush.bf16.msra.mxu0 %v610
    %970 = vmatpush.bf16.msra.mxu0 %v594
    %971 = vmatpush.bf16.msra.mxu0 %v578
    %972 = vmatmul.bf16.gmra.mxu0 %v55
    %v973 = vpop.f32.mrf.mxu0
    %v974 = vadd.f32 0.0, %v973
    %v975 = vpop.f32.mrf.mxu0
    %v976 = vadd.f32 0.0, %v975
    %977 = vdwg.mxu0
    %978 = vmatpush.bf16.msra.mxu0 %v691
    %979 = vmatpush.bf16.msra.mxu0 %v675
    %980 = vmatpush.bf16.msra.mxu0 %v659
    %981 = vmatpush.bf16.msra.mxu0 %v643
    %982 = vmatpush.bf16.msra.mxu0 %v627
    %983 = vmatpush.bf16.msra.mxu0 %v611
    %984 = vmatpush.bf16.msra.mxu0 %v595
    %985 = vmatpush.bf16.msra.mxu0 %v579
    %986 = vmatmul.bf16.gmra.mxu0 %v55
    %v987 = vpop.f32.mrf.mxu0
    %v988 = vadd.f32 0.0, %v987
    %v989 = vpop.f32.mrf.mxu0
    %v990 = vadd.f32 0.0, %v989
    %991 = vdwg.mxu0
    %992 = vmatpush.bf16.msra.mxu0 %v692
    %993 = vmatpush.bf16.msra.mxu0 %v676
    %994 = vmatpush.bf16.msra.mxu0 %v660
    %995 = vmatpush.bf16.msra.mxu0 %v644
    %996 = vmatpush.bf16.msra.mxu0 %v628
    %997 = vmatpush.bf16.msra.mxu0 %v612
    %998 = vmatpush.bf16.msra.mxu0 %v596
    %999 = vmatpush.bf16.msra.mxu0 %v580
    %1000 = vmatmul.bf16.gmra.mxu0 %v55
    %v1001 = vpop.f32.mrf.mxu0
    %v1002 = vadd.f32 0.0, %v1001
    %v1003 = vpop.f32.mrf.mxu0
    %v1004 = vadd.f32 0.0, %v1003
    %1005 = vdwg.mxu0
    %1006 = vmatpush.bf16.msra.mxu0 %v693
    %1007 = vmatpush.bf16.msra.mxu0 %v677
    %1008 = vmatpush.bf16.msra.mxu0 %v661
    %1009 = vmatpush.bf16.msra.mxu0 %v645
    %1010 = vmatpush.bf16.msra.mxu0 %v629
    %1011 = vmatpush.bf16.msra.mxu0 %v613
    %1012 = vmatpush.bf16.msra.mxu0 %v597
    %1013 = vmatpush.bf16.msra.mxu0 %v581
    %1014 = vmatmul.bf16.gmra.mxu0 %v55
    %v1015 = vpop.f32.mrf.mxu0
    %v1016 = vadd.f32 0.0, %v1015
    %v1017 = vpop.f32.mrf.mxu0
    %v1018 = vadd.f32 0.0, %v1017
    %1019 = vdwg.mxu0
    %1020 = vmatpush.bf16.msra.mxu0 %v694
    %1021 = vmatpush.bf16.msra.mxu0 %v678
    %1022 = vmatpush.bf16.msra.mxu0 %v662
    %1023 = vmatpush.bf16.msra.mxu0 %v646
    %1024 = vmatpush.bf16.msra.mxu0 %v630
    %1025 = vmatpush.bf16.msra.mxu0 %v614
    %1026 = vmatpush.bf16.msra.mxu0 %v598
    %1027 = vmatpush.bf16.msra.mxu0 %v582
    %1028 = vmatmul.bf16.gmra.mxu0 %v55
    %v1029 = vpop.f32.mrf.mxu0
    %v1030 = vadd.f32 0.0, %v1029
    %v1031 = vpop.f32.mrf.mxu0
    %v1032 = vadd.f32 0.0, %v1031
    %1033 = vdwg.mxu0
    %1034 = vmatpush.bf16.msra.mxu0 %v695
    %1035 = vmatpush.bf16.msra.mxu0 %v679
    %1036 = vmatpush.bf16.msra.mxu0 %v663
    %1037 = vmatpush.bf16.msra.mxu0 %v647
    %1038 = vmatpush.bf16.msra.mxu0 %v631
    %1039 = vmatpush.bf16.msra.mxu0 %v615
    %1040 = vmatpush.bf16.msra.mxu0 %v599
    %1041 = vmatpush.bf16.msra.mxu0 %v583
    %1042 = vmatmul.bf16.gmra.mxu0 %v55
    %v1043 = vpop.f32.mrf.mxu0
    %v1044 = vadd.f32 0.0, %v1043
    %v1045 = vpop.f32.mrf.mxu0
    %v1046 = vadd.f32 0.0, %v1045
    %1047 = vdwg.mxu0
    %v1048 = vmax.f32 %v834, 0.0
    %v1049 = vmax.f32 %v848, 0.0
    %v1050 = vmax.f32 %v862, 0.0
    %v1051 = vmax.f32 %v876, 0.0
    %v1052 = vmax.f32 %v890, 0.0
    %v1053 = vmax.f32 %v904, 0.0
    %v1054 = vmax.f32 %v918, 0.0
    %v1055 = vmax.f32 %v932, 0.0
    %v1056 = vmax.f32 %v946, 0.0
    %v1057 = vmax.f32 %v960, 0.0
    %v1058 = vmax.f32 %v974, 0.0
    %v1059 = vmax.f32 %v988, 0.0
    %v1060 = vmax.f32 %v1002, 0.0
    %v1061 = vmax.f32 %v1016, 0.0
    %v1062 = vmax.f32 %v1030, 0.0
    %v1063 = vmax.f32 %v1044, 0.0
    %v1064 = vmax.f32 %v836, 0.0
    %v1065 = vmax.f32 %v850, 0.0
    %v1066 = vmax.f32 %v864, 0.0
    %v1067 = vmax.f32 %v878, 0.0
    %v1068 = vmax.f32 %v892, 0.0
    %v1069 = vmax.f32 %v906, 0.0
    %v1070 = vmax.f32 %v920, 0.0
    %v1071 = vmax.f32 %v934, 0.0
    %v1072 = vmax.f32 %v948, 0.0
    %v1073 = vmax.f32 %v962, 0.0
    %v1074 = vmax.f32 %v976, 0.0
    %v1075 = vmax.f32 %v990, 0.0
    %v1076 = vmax.f32 %v1004, 0.0
    %v1077 = vmax.f32 %v1018, 0.0
    %v1078 = vmax.f32 %v1032, 0.0
    %v1079 = vmax.f32 %v1046, 0.0
    %v1080 = vpack.c.bf16 %v1064, %v1048
    %v1081 = vpack.c.bf16 %v1065, %v1049
    %v1082 = vpack.c.bf16 %v1066, %v1050
    %v1083 = vpack.c.bf16 %v1067, %v1051
    %v1084 = vpack.c.bf16 %v1068, %v1052
    %v1085 = vpack.c.bf16 %v1069, %v1053
    %v1086 = vpack.c.bf16 %v1070, %v1054
    %v1087 = vpack.c.bf16 %v1071, %v1055
    %v1088 = vpack.c.bf16 %v1072, %v1056
    %v1089 = vpack.c.bf16 %v1073, %v1057
    %v1090 = vpack.c.bf16 %v1074, %v1058
    %v1091 = vpack.c.bf16 %v1075, %v1059
    %v1092 = vpack.c.bf16 %v1076, %v1060
    %v1093 = vpack.c.bf16 %v1077, %v1061
    %v1094 = vpack.c.bf16 %v1078, %v1062
    %v1095 = vpack.c.bf16 %v1079, %v1063
    %v1096 = vld [vmem:[#allocation5] sm:$0xf]
    %v1097 = vld [vmem:[#allocation5 + $0x4] sm:$0xf]
    %v1098 = vld [vmem:[#allocation5 + $0x8] sm:$0xf]
    %v1099 = vld [vmem:[#allocation5 + $0xc] sm:$0xf]
    %v1100 = vld [vmem:[#allocation5 + $0x10] sm:$0xf]
    %v1101 = vld [vmem:[#allocation5 + $0x14] sm:$0xf]
    %v1102 = vld [vmem:[#allocation5 + $0x18] sm:$0xf]
    %v1103 = vld [vmem:[#allocation5 + $0x1c] sm:$0xf]
    %v1104 = vld [vmem:[#allocation5 + $0x20] sm:$0xf]
    %v1105 = vld [vmem:[#allocation5 + $0x24] sm:$0xf]
    %v1106 = vld [vmem:[#allocation5 + $0x28] sm:$0xf]
    %v1107 = vld [vmem:[#allocation5 + $0x2c] sm:$0xf]
    %v1108 = vld [vmem:[#allocation5 + $0x30] sm:$0xf]
    %v1109 = vld [vmem:[#allocation5 + $0x34] sm:$0xf]
    %v1110 = vld [vmem:[#allocation5 + $0x38] sm:$0xf]
    %v1111 = vld [vmem:[#allocation5 + $0x3c] sm:$0xf]
    %v1112 = vld [vmem:[#allocation5 + $0x40] sm:$0xf]
    %v1113 = vld [vmem:[#allocation5 + $0x44] sm:$0xf]
    %v1114 = vld [vmem:[#allocation5 + $0x48] sm:$0xf]
    %v1115 = vld [vmem:[#allocation5 + $0x4c] sm:$0xf]
    %v1116 = vld [vmem:[#allocation5 + $0x50] sm:$0xf]
    %v1117 = vld [vmem:[#allocation5 + $0x54] sm:$0xf]
    %v1118 = vld [vmem:[#allocation5 + $0x58] sm:$0xf]
    %v1119 = vld [vmem:[#allocation5 + $0x5c] sm:$0xf]
    %v1120 = vld [vmem:[#allocation5 + $0x60] sm:$0xf]
    %v1121 = vld [vmem:[#allocation5 + $0x64] sm:$0xf]
    %v1122 = vld [vmem:[#allocation5 + $0x68] sm:$0xf]
    %v1123 = vld [vmem:[#allocation5 + $0x6c] sm:$0xf]
    %v1124 = vld [vmem:[#allocation5 + $0x70] sm:$0xf]
    %v1125 = vld [vmem:[#allocation5 + $0x74] sm:$0xf]
    %v1126 = vld [vmem:[#allocation5 + $0x78] sm:$0xf]
    %v1127 = vld [vmem:[#allocation5 + $0x7c] sm:$0xf]
    %v1128 = vld [vmem:[#allocation5 + $0x80] sm:$0xf]
    %v1129 = vld [vmem:[#allocation5 + $0x84] sm:$0xf]
    %v1130 = vld [vmem:[#allocation5 + $0x88] sm:$0xf]
    %v1131 = vld [vmem:[#allocation5 + $0x8c] sm:$0xf]
    %v1132 = vld [vmem:[#allocation5 + $0x90] sm:$0xf]
    %v1133 = vld [vmem:[#allocation5 + $0x94] sm:$0xf]
    %v1134 = vld [vmem:[#allocation5 + $0x98] sm:$0xf]
    %v1135 = vld [vmem:[#allocation5 + $0x9c] sm:$0xf]
    %v1136 = vld [vmem:[#allocation5 + $0xa0] sm:$0xf]
    %v1137 = vld [vmem:[#allocation5 + $0xa4] sm:$0xf]
    %v1138 = vld [vmem:[#allocation5 + $0xa8] sm:$0xf]
    %v1139 = vld [vmem:[#allocation5 + $0xac] sm:$0xf]
    %v1140 = vld [vmem:[#allocation5 + $0xb0] sm:$0xf]
    %v1141 = vld [vmem:[#allocation5 + $0xb4] sm:$0xf]
    %v1142 = vld [vmem:[#allocation5 + $0xb8] sm:$0xf]
    %v1143 = vld [vmem:[#allocation5 + $0xbc] sm:$0xf]
    %v1144 = vld [vmem:[#allocation5 + $0xc0] sm:$0xf]
    %v1145 = vld [vmem:[#allocation5 + $0xc4] sm:$0xf]
    %v1146 = vld [vmem:[#allocation5 + $0xc8] sm:$0xf]
    %v1147 = vld [vmem:[#allocation5 + $0xcc] sm:$0xf]
    %v1148 = vld [vmem:[#allocation5 + $0xd0] sm:$0xf]
    %v1149 = vld [vmem:[#allocation5 + $0xd4] sm:$0xf]
    %v1150 = vld [vmem:[#allocation5 + $0xd8] sm:$0xf]
    %v1151 = vld [vmem:[#allocation5 + $0xdc] sm:$0xf]
    %v1152 = vld [vmem:[#allocation5 + $0xe0] sm:$0xf]
    %v1153 = vld [vmem:[#allocation5 + $0xe4] sm:$0xf]
    %v1154 = vld [vmem:[#allocation5 + $0xe8] sm:$0xf]
    %v1155 = vld [vmem:[#allocation5 + $0xec] sm:$0xf]
    %v1156 = vld [vmem:[#allocation5 + $0xf0] sm:$0xf]
    %v1157 = vld [vmem:[#allocation5 + $0xf4] sm:$0xf]
    %v1158 = vld [vmem:[#allocation5 + $0xf8] sm:$0xf]
    %v1159 = vld [vmem:[#allocation5 + $0xfc] sm:$0xf]
    %v1160 = vld [vmem:[#allocation5 + $0x100] sm:$0xf]
    %v1161 = vld [vmem:[#allocation5 + $0x104] sm:$0xf]
    %v1162 = vld [vmem:[#allocation5 + $0x108] sm:$0xf]
    %v1163 = vld [vmem:[#allocation5 + $0x10c] sm:$0xf]
    %v1164 = vld [vmem:[#allocation5 + $0x110] sm:$0xf]
    %v1165 = vld [vmem:[#allocation5 + $0x114] sm:$0xf]
    %v1166 = vld [vmem:[#allocation5 + $0x118] sm:$0xf]
    %v1167 = vld [vmem:[#allocation5 + $0x11c] sm:$0xf]
    %v1168 = vld [vmem:[#allocation5 + $0x120] sm:$0xf]
    %v1169 = vld [vmem:[#allocation5 + $0x124] sm:$0xf]
    %v1170 = vld [vmem:[#allocation5 + $0x128] sm:$0xf]
    %v1171 = vld [vmem:[#allocation5 + $0x12c] sm:$0xf]
    %v1172 = vld [vmem:[#allocation5 + $0x130] sm:$0xf]
    %v1173 = vld [vmem:[#allocation5 + $0x134] sm:$0xf]
    %v1174 = vld [vmem:[#allocation5 + $0x138] sm:$0xf]
    %v1175 = vld [vmem:[#allocation5 + $0x13c] sm:$0xf]
    %v1176 = vld [vmem:[#allocation5 + $0x140] sm:$0xf]
    %v1177 = vld [vmem:[#allocation5 + $0x144] sm:$0xf]
    %v1178 = vld [vmem:[#allocation5 + $0x148] sm:$0xf]
    %v1179 = vld [vmem:[#allocation5 + $0x14c] sm:$0xf]
    %v1180 = vld [vmem:[#allocation5 + $0x150] sm:$0xf]
    %v1181 = vld [vmem:[#allocation5 + $0x154] sm:$0xf]
    %v1182 = vld [vmem:[#allocation5 + $0x158] sm:$0xf]
    %v1183 = vld [vmem:[#allocation5 + $0x15c] sm:$0xf]
    %v1184 = vld [vmem:[#allocation5 + $0x160] sm:$0xf]
    %v1185 = vld [vmem:[#allocation5 + $0x164] sm:$0xf]
    %v1186 = vld [vmem:[#allocation5 + $0x168] sm:$0xf]
    %v1187 = vld [vmem:[#allocation5 + $0x16c] sm:$0xf]
    %v1188 = vld [vmem:[#allocation5 + $0x170] sm:$0xf]
    %v1189 = vld [vmem:[#allocation5 + $0x174] sm:$0xf]
    %v1190 = vld [vmem:[#allocation5 + $0x178] sm:$0xf]
    %v1191 = vld [vmem:[#allocation5 + $0x17c] sm:$0xf]
    %v1192 = vld [vmem:[#allocation5 + $0x180] sm:$0xf]
    %v1193 = vld [vmem:[#allocation5 + $0x184] sm:$0xf]
    %v1194 = vld [vmem:[#allocation5 + $0x188] sm:$0xf]
    %v1195 = vld [vmem:[#allocation5 + $0x18c] sm:$0xf]
    %v1196 = vld [vmem:[#allocation5 + $0x190] sm:$0xf]
    %v1197 = vld [vmem:[#allocation5 + $0x194] sm:$0xf]
    %v1198 = vld [vmem:[#allocation5 + $0x198] sm:$0xf]
    %v1199 = vld [vmem:[#allocation5 + $0x19c] sm:$0xf]
    %v1200 = vld [vmem:[#allocation5 + $0x1a0] sm:$0xf]
    %v1201 = vld [vmem:[#allocation5 + $0x1a4] sm:$0xf]
    %v1202 = vld [vmem:[#allocation5 + $0x1a8] sm:$0xf]
    %v1203 = vld [vmem:[#allocation5 + $0x1ac] sm:$0xf]
    %v1204 = vld [vmem:[#allocation5 + $0x1b0] sm:$0xf]
    %v1205 = vld [vmem:[#allocation5 + $0x1b4] sm:$0xf]
    %v1206 = vld [vmem:[#allocation5 + $0x1b8] sm:$0xf]
    %v1207 = vld [vmem:[#allocation5 + $0x1bc] sm:$0xf]
    %v1208 = vld [vmem:[#allocation5 + $0x1c0] sm:$0xf]
    %v1209 = vld [vmem:[#allocation5 + $0x1c4] sm:$0xf]
    %v1210 = vld [vmem:[#allocation5 + $0x1c8] sm:$0xf]
    %v1211 = vld [vmem:[#allocation5 + $0x1cc] sm:$0xf]
    %v1212 = vld [vmem:[#allocation5 + $0x1d0] sm:$0xf]
    %v1213 = vld [vmem:[#allocation5 + $0x1d4] sm:$0xf]
    %v1214 = vld [vmem:[#allocation5 + $0x1d8] sm:$0xf]
    %v1215 = vld [vmem:[#allocation5 + $0x1dc] sm:$0xf]
    %v1216 = vld [vmem:[#allocation5 + $0x1e0] sm:$0xf]
    %v1217 = vld [vmem:[#allocation5 + $0x1e4] sm:$0xf]
    %v1218 = vld [vmem:[#allocation5 + $0x1e8] sm:$0xf]
    %v1219 = vld [vmem:[#allocation5 + $0x1ec] sm:$0xf]
    %v1220 = vld [vmem:[#allocation5 + $0x1f0] sm:$0xf]
    %v1221 = vld [vmem:[#allocation5 + $0x1f4] sm:$0xf]
    %v1222 = vld [vmem:[#allocation5 + $0x1f8] sm:$0xf]
    %v1223 = vld [vmem:[#allocation5 + $0x1fc] sm:$0xf]
    %v1224 = vld [vmem:[#allocation5 + $0x200] sm:$0xf]
    %v1225 = vld [vmem:[#allocation5 + $0x204] sm:$0xf]
    %v1226 = vld [vmem:[#allocation5 + $0x208] sm:$0xf]
    %v1227 = vld [vmem:[#allocation5 + $0x20c] sm:$0xf]
    %v1228 = vld [vmem:[#allocation5 + $0x210] sm:$0xf]
    %v1229 = vld [vmem:[#allocation5 + $0x214] sm:$0xf]
    %v1230 = vld [vmem:[#allocation5 + $0x218] sm:$0xf]
    %v1231 = vld [vmem:[#allocation5 + $0x21c] sm:$0xf]
    %v1232 = vld [vmem:[#allocation5 + $0x220] sm:$0xf]
    %v1233 = vld [vmem:[#allocation5 + $0x224] sm:$0xf]
    %v1234 = vld [vmem:[#allocation5 + $0x228] sm:$0xf]
    %v1235 = vld [vmem:[#allocation5 + $0x22c] sm:$0xf]
    %v1236 = vld [vmem:[#allocation5 + $0x230] sm:$0xf]
    %v1237 = vld [vmem:[#allocation5 + $0x234] sm:$0xf]
    %v1238 = vld [vmem:[#allocation5 + $0x238] sm:$0xf]
    %v1239 = vld [vmem:[#allocation5 + $0x23c] sm:$0xf]
    %v1240 = vld [vmem:[#allocation5 + $0x240] sm:$0xf]
    %v1241 = vld [vmem:[#allocation5 + $0x244] sm:$0xf]
    %v1242 = vld [vmem:[#allocation5 + $0x248] sm:$0xf]
    %v1243 = vld [vmem:[#allocation5 + $0x24c] sm:$0xf]
    %v1244 = vld [vmem:[#allocation5 + $0x250] sm:$0xf]
    %v1245 = vld [vmem:[#allocation5 + $0x254] sm:$0xf]
    %v1246 = vld [vmem:[#allocation5 + $0x258] sm:$0xf]
    %v1247 = vld [vmem:[#allocation5 + $0x25c] sm:$0xf]
    %v1248 = vld [vmem:[#allocation5 + $0x260] sm:$0xf]
    %v1249 = vld [vmem:[#allocation5 + $0x264] sm:$0xf]
    %v1250 = vld [vmem:[#allocation5 + $0x268] sm:$0xf]
    %v1251 = vld [vmem:[#allocation5 + $0x26c] sm:$0xf]
    %v1252 = vld [vmem:[#allocation5 + $0x270] sm:$0xf]
    %v1253 = vld [vmem:[#allocation5 + $0x274] sm:$0xf]
    %v1254 = vld [vmem:[#allocation5 + $0x278] sm:$0xf]
    %v1255 = vld [vmem:[#allocation5 + $0x27c] sm:$0xf]
    %v1256 = vld [vmem:[#allocation5 + $0x280] sm:$0xf]
    %v1257 = vld [vmem:[#allocation5 + $0x284] sm:$0xf]
    %v1258 = vld [vmem:[#allocation5 + $0x288] sm:$0xf]
    %v1259 = vld [vmem:[#allocation5 + $0x28c] sm:$0xf]
    %v1260 = vld [vmem:[#allocation5 + $0x290] sm:$0xf]
    %v1261 = vld [vmem:[#allocation5 + $0x294] sm:$0xf]
    %v1262 = vld [vmem:[#allocation5 + $0x298] sm:$0xf]
    %v1263 = vld [vmem:[#allocation5 + $0x29c] sm:$0xf]
    %v1264 = vld [vmem:[#allocation5 + $0x2a0] sm:$0xf]
    %v1265 = vld [vmem:[#allocation5 + $0x2a4] sm:$0xf]
    %v1266 = vld [vmem:[#allocation5 + $0x2a8] sm:$0xf]
    %v1267 = vld [vmem:[#allocation5 + $0x2ac] sm:$0xf]
    %v1268 = vld [vmem:[#allocation5 + $0x2b0] sm:$0xf]
    %v1269 = vld [vmem:[#allocation5 + $0x2b4] sm:$0xf]
    %v1270 = vld [vmem:[#allocation5 + $0x2b8] sm:$0xf]
    %v1271 = vld [vmem:[#allocation5 + $0x2bc] sm:$0xf]
    %v1272 = vld [vmem:[#allocation5 + $0x2c0] sm:$0xf]
    %v1273 = vld [vmem:[#allocation5 + $0x2c4] sm:$0xf]
    %v1274 = vld [vmem:[#allocation5 + $0x2c8] sm:$0xf]
    %v1275 = vld [vmem:[#allocation5 + $0x2cc] sm:$0xf]
    %v1276 = vld [vmem:[#allocation5 + $0x2d0] sm:$0xf]
    %v1277 = vld [vmem:[#allocation5 + $0x2d4] sm:$0xf]
    %v1278 = vld [vmem:[#allocation5 + $0x2d8] sm:$0xf]
    %v1279 = vld [vmem:[#allocation5 + $0x2dc] sm:$0xf]
    %v1280 = vld [vmem:[#allocation5 + $0x2e0] sm:$0xf]
    %v1281 = vld [vmem:[#allocation5 + $0x2e4] sm:$0xf]
    %v1282 = vld [vmem:[#allocation5 + $0x2e8] sm:$0xf]
    %v1283 = vld [vmem:[#allocation5 + $0x2ec] sm:$0xf]
    %v1284 = vld [vmem:[#allocation5 + $0x2f0] sm:$0xf]
    %v1285 = vld [vmem:[#allocation5 + $0x2f4] sm:$0xf]
    %v1286 = vld [vmem:[#allocation5 + $0x2f8] sm:$0xf]
    %v1287 = vld [vmem:[#allocation5 + $0x2fc] sm:$0xf]
    %v1288 = vld [vmem:[#allocation5 + $0x300] sm:$0xf]
    %v1289 = vld [vmem:[#allocation5 + $0x304] sm:$0xf]
    %v1290 = vld [vmem:[#allocation5 + $0x308] sm:$0xf]
    %v1291 = vld [vmem:[#allocation5 + $0x30c] sm:$0xf]
    %v1292 = vld [vmem:[#allocation5 + $0x310] sm:$0xf]
    %v1293 = vld [vmem:[#allocation5 + $0x314] sm:$0xf]
    %v1294 = vld [vmem:[#allocation5 + $0x318] sm:$0xf]
    %v1295 = vld [vmem:[#allocation5 + $0x31c] sm:$0xf]
    %v1296 = vld [vmem:[#allocation5 + $0x320] sm:$0xf]
    %v1297 = vld [vmem:[#allocation5 + $0x324] sm:$0xf]
    %v1298 = vld [vmem:[#allocation5 + $0x328] sm:$0xf]
    %v1299 = vld [vmem:[#allocation5 + $0x32c] sm:$0xf]
    %v1300 = vld [vmem:[#allocation5 + $0x330] sm:$0xf]
    %v1301 = vld [vmem:[#allocation5 + $0x334] sm:$0xf]
    %v1302 = vld [vmem:[#allocation5 + $0x338] sm:$0xf]
    %v1303 = vld [vmem:[#allocation5 + $0x33c] sm:$0xf]
    %v1304 = vld [vmem:[#allocation5 + $0x340] sm:$0xf]
    %v1305 = vld [vmem:[#allocation5 + $0x344] sm:$0xf]
    %v1306 = vld [vmem:[#allocation5 + $0x348] sm:$0xf]
    %v1307 = vld [vmem:[#allocation5 + $0x34c] sm:$0xf]
    %v1308 = vld [vmem:[#allocation5 + $0x350] sm:$0xf]
    %v1309 = vld [vmem:[#allocation5 + $0x354] sm:$0xf]
    %v1310 = vld [vmem:[#allocation5 + $0x358] sm:$0xf]
    %v1311 = vld [vmem:[#allocation5 + $0x35c] sm:$0xf]
    %v1312 = vld [vmem:[#allocation5 + $0x360] sm:$0xf]
    %v1313 = vld [vmem:[#allocation5 + $0x364] sm:$0xf]
    %v1314 = vld [vmem:[#allocation5 + $0x368] sm:$0xf]
    %v1315 = vld [vmem:[#allocation5 + $0x36c] sm:$0xf]
    %v1316 = vld [vmem:[#allocation5 + $0x370] sm:$0xf]
    %v1317 = vld [vmem:[#allocation5 + $0x374] sm:$0xf]
    %v1318 = vld [vmem:[#allocation5 + $0x378] sm:$0xf]
    %v1319 = vld [vmem:[#allocation5 + $0x37c] sm:$0xf]
    %v1320 = vld [vmem:[#allocation5 + $0x380] sm:$0xf]
    %v1321 = vld [vmem:[#allocation5 + $0x384] sm:$0xf]
    %v1322 = vld [vmem:[#allocation5 + $0x388] sm:$0xf]
    %v1323 = vld [vmem:[#allocation5 + $0x38c] sm:$0xf]
    %v1324 = vld [vmem:[#allocation5 + $0x390] sm:$0xf]
    %v1325 = vld [vmem:[#allocation5 + $0x394] sm:$0xf]
    %v1326 = vld [vmem:[#allocation5 + $0x398] sm:$0xf]
    %v1327 = vld [vmem:[#allocation5 + $0x39c] sm:$0xf]
    %v1328 = vld [vmem:[#allocation5 + $0x3a0] sm:$0xf]
    %v1329 = vld [vmem:[#allocation5 + $0x3a4] sm:$0xf]
    %v1330 = vld [vmem:[#allocation5 + $0x3a8] sm:$0xf]
    %v1331 = vld [vmem:[#allocation5 + $0x3ac] sm:$0xf]
    %v1332 = vld [vmem:[#allocation5 + $0x3b0] sm:$0xf]
    %v1333 = vld [vmem:[#allocation5 + $0x3b4] sm:$0xf]
    %v1334 = vld [vmem:[#allocation5 + $0x3b8] sm:$0xf]
    %v1335 = vld [vmem:[#allocation5 + $0x3bc] sm:$0xf]
    %v1336 = vld [vmem:[#allocation5 + $0x3c0] sm:$0xf]
    %v1337 = vld [vmem:[#allocation5 + $0x3c4] sm:$0xf]
    %v1338 = vld [vmem:[#allocation5 + $0x3c8] sm:$0xf]
    %v1339 = vld [vmem:[#allocation5 + $0x3cc] sm:$0xf]
    %v1340 = vld [vmem:[#allocation5 + $0x3d0] sm:$0xf]
    %v1341 = vld [vmem:[#allocation5 + $0x3d4] sm:$0xf]
    %v1342 = vld [vmem:[#allocation5 + $0x3d8] sm:$0xf]
    %v1343 = vld [vmem:[#allocation5 + $0x3dc] sm:$0xf]
    %v1344 = vld [vmem:[#allocation5 + $0x3e0] sm:$0xf]
    %v1345 = vld [vmem:[#allocation5 + $0x3e4] sm:$0xf]
    %v1346 = vld [vmem:[#allocation5 + $0x3e8] sm:$0xf]
    %v1347 = vld [vmem:[#allocation5 + $0x3ec] sm:$0xf]
    %v1348 = vld [vmem:[#allocation5 + $0x3f0] sm:$0xf]
    %v1349 = vld [vmem:[#allocation5 + $0x3f4] sm:$0xf]
    %v1350 = vld [vmem:[#allocation5 + $0x3f8] sm:$0xf]
    %v1351 = vld [vmem:[#allocation5 + $0x3fc] sm:$0xf]
    %v1608 = vunpack.c.l.b16 %v1096
    %v1609 = vunpack.c.l.b16 %v1097
    %v1610 = vunpack.c.l.b16 %v1098
    %v1611 = vunpack.c.l.b16 %v1099
    %v1612 = vunpack.c.l.b16 %v1100
    %v1613 = vunpack.c.l.b16 %v1101
    %v1614 = vunpack.c.l.b16 %v1102
    %v1615 = vunpack.c.l.b16 %v1103
    %v1616 = vunpack.c.l.b16 %v1104
    %v1617 = vunpack.c.l.b16 %v1105
    %v1618 = vunpack.c.l.b16 %v1106
    %v1619 = vunpack.c.l.b16 %v1107
    %v1620 = vunpack.c.l.b16 %v1108
    %v1621 = vunpack.c.l.b16 %v1109
    %v1622 = vunpack.c.l.b16 %v1110
    %v1623 = vunpack.c.l.b16 %v1111
    %v1624 = vunpack.c.l.b16 %v1112
    %v1625 = vunpack.c.l.b16 %v1113
    %v1626 = vunpack.c.l.b16 %v1114
    %v1627 = vunpack.c.l.b16 %v1115
    %v1628 = vunpack.c.l.b16 %v1116
    %v1629 = vunpack.c.l.b16 %v1117
    %v1630 = vunpack.c.l.b16 %v1118
    %v1631 = vunpack.c.l.b16 %v1119
    %v1632 = vunpack.c.l.b16 %v1120
    %v1633 = vunpack.c.l.b16 %v1121
    %v1634 = vunpack.c.l.b16 %v1122
    %v1635 = vunpack.c.l.b16 %v1123
    %v1636 = vunpack.c.l.b16 %v1124
    %v1637 = vunpack.c.l.b16 %v1125
    %v1638 = vunpack.c.l.b16 %v1126
    %v1639 = vunpack.c.l.b16 %v1127
    %v1640 = vunpack.c.l.b16 %v1128
    %v1641 = vunpack.c.l.b16 %v1129
    %v1642 = vunpack.c.l.b16 %v1130
    %v1643 = vunpack.c.l.b16 %v1131
    %v1644 = vunpack.c.l.b16 %v1132
    %v1645 = vunpack.c.l.b16 %v1133
    %v1646 = vunpack.c.l.b16 %v1134
    %v1647 = vunpack.c.l.b16 %v1135
    %v1648 = vunpack.c.l.b16 %v1136
    %v1649 = vunpack.c.l.b16 %v1137
    %v1650 = vunpack.c.l.b16 %v1138
    %v1651 = vunpack.c.l.b16 %v1139
    %v1652 = vunpack.c.l.b16 %v1140
    %v1653 = vunpack.c.l.b16 %v1141
    %v1654 = vunpack.c.l.b16 %v1142
    %v1655 = vunpack.c.l.b16 %v1143
    %v1656 = vunpack.c.l.b16 %v1144
    %v1657 = vunpack.c.l.b16 %v1145
    %v1658 = vunpack.c.l.b16 %v1146
    %v1659 = vunpack.c.l.b16 %v1147
    %v1660 = vunpack.c.l.b16 %v1148
    %v1661 = vunpack.c.l.b16 %v1149
    %v1662 = vunpack.c.l.b16 %v1150
    %v1663 = vunpack.c.l.b16 %v1151
    %v1664 = vunpack.c.l.b16 %v1152
    %v1665 = vunpack.c.l.b16 %v1153
    %v1666 = vunpack.c.l.b16 %v1154
    %v1667 = vunpack.c.l.b16 %v1155
    %v1668 = vunpack.c.l.b16 %v1156
    %v1669 = vunpack.c.l.b16 %v1157
    %v1670 = vunpack.c.l.b16 %v1158
    %v1671 = vunpack.c.l.b16 %v1159
    %v1672 = vunpack.c.l.b16 %v1160
    %v1673 = vunpack.c.l.b16 %v1161
    %v1674 = vunpack.c.l.b16 %v1162
    %v1675 = vunpack.c.l.b16 %v1163
    %v1676 = vunpack.c.l.b16 %v1164
    %v1677 = vunpack.c.l.b16 %v1165
    %v1678 = vunpack.c.l.b16 %v1166
    %v1679 = vunpack.c.l.b16 %v1167
    %v1680 = vunpack.c.l.b16 %v1168
    %v1681 = vunpack.c.l.b16 %v1169
    %v1682 = vunpack.c.l.b16 %v1170
    %v1683 = vunpack.c.l.b16 %v1171
    %v1684 = vunpack.c.l.b16 %v1172
    %v1685 = vunpack.c.l.b16 %v1173
    %v1686 = vunpack.c.l.b16 %v1174
    %v1687 = vunpack.c.l.b16 %v1175
    %v1688 = vunpack.c.l.b16 %v1176
    %v1689 = vunpack.c.l.b16 %v1177
    %v1690 = vunpack.c.l.b16 %v1178
    %v1691 = vunpack.c.l.b16 %v1179
    %v1692 = vunpack.c.l.b16 %v1180
    %v1693 = vunpack.c.l.b16 %v1181
    %v1694 = vunpack.c.l.b16 %v1182
    %v1695 = vunpack.c.l.b16 %v1183
    %v1696 = vunpack.c.l.b16 %v1184
    %v1697 = vunpack.c.l.b16 %v1185
    %v1698 = vunpack.c.l.b16 %v1186
    %v1699 = vunpack.c.l.b16 %v1187
    %v1700 = vunpack.c.l.b16 %v1188
    %v1701 = vunpack.c.l.b16 %v1189
    %v1702 = vunpack.c.l.b16 %v1190
    %v1703 = vunpack.c.l.b16 %v1191
    %v1704 = vunpack.c.l.b16 %v1192
    %v1705 = vunpack.c.l.b16 %v1193
    %v1706 = vunpack.c.l.b16 %v1194
    %v1707 = vunpack.c.l.b16 %v1195
    %v1708 = vunpack.c.l.b16 %v1196
    %v1709 = vunpack.c.l.b16 %v1197
    %v1710 = vunpack.c.l.b16 %v1198
    %v1711 = vunpack.c.l.b16 %v1199
    %v1712 = vunpack.c.l.b16 %v1200
    %v1713 = vunpack.c.l.b16 %v1201
    %v1714 = vunpack.c.l.b16 %v1202
    %v1715 = vunpack.c.l.b16 %v1203
    %v1716 = vunpack.c.l.b16 %v1204
    %v1717 = vunpack.c.l.b16 %v1205
    %v1718 = vunpack.c.l.b16 %v1206
    %v1719 = vunpack.c.l.b16 %v1207
    %v1720 = vunpack.c.l.b16 %v1208
    %v1721 = vunpack.c.l.b16 %v1209
    %v1722 = vunpack.c.l.b16 %v1210
    %v1723 = vunpack.c.l.b16 %v1211
    %v1724 = vunpack.c.l.b16 %v1212
    %v1725 = vunpack.c.l.b16 %v1213
    %v1726 = vunpack.c.l.b16 %v1214
    %v1727 = vunpack.c.l.b16 %v1215
    %v1728 = vunpack.c.l.b16 %v1216
    %v1729 = vunpack.c.l.b16 %v1217
    %v1730 = vunpack.c.l.b16 %v1218
    %v1731 = vunpack.c.l.b16 %v1219
    %v1732 = vunpack.c.l.b16 %v1220
    %v1733 = vunpack.c.l.b16 %v1221
    %v1734 = vunpack.c.l.b16 %v1222
    %v1735 = vunpack.c.l.b16 %v1223
    %v1736 = vunpack.c.l.b16 %v1224
    %v1737 = vunpack.c.l.b16 %v1225
    %v1738 = vunpack.c.l.b16 %v1226
    %v1739 = vunpack.c.l.b16 %v1227
    %v1740 = vunpack.c.l.b16 %v1228
    %v1741 = vunpack.c.l.b16 %v1229
    %v1742 = vunpack.c.l.b16 %v1230
    %v1743 = vunpack.c.l.b16 %v1231
    %v1744 = vunpack.c.l.b16 %v1232
    %v1745 = vunpack.c.l.b16 %v1233
    %v1746 = vunpack.c.l.b16 %v1234
    %v1747 = vunpack.c.l.b16 %v1235
    %v1748 = vunpack.c.l.b16 %v1236
    %v1749 = vunpack.c.l.b16 %v1237
    %v1750 = vunpack.c.l.b16 %v1238
    %v1751 = vunpack.c.l.b16 %v1239
    %v1752 = vunpack.c.l.b16 %v1240
    %v1753 = vunpack.c.l.b16 %v1241
    %v1754 = vunpack.c.l.b16 %v1242
    %v1755 = vunpack.c.l.b16 %v1243
    %v1756 = vunpack.c.l.b16 %v1244
    %v1757 = vunpack.c.l.b16 %v1245
    %v1758 = vunpack.c.l.b16 %v1246
    %v1759 = vunpack.c.l.b16 %v1247
    %v1760 = vunpack.c.l.b16 %v1248
    %v1761 = vunpack.c.l.b16 %v1249
    %v1762 = vunpack.c.l.b16 %v1250
    %v1763 = vunpack.c.l.b16 %v1251
    %v1764 = vunpack.c.l.b16 %v1252
    %v1765 = vunpack.c.l.b16 %v1253
    %v1766 = vunpack.c.l.b16 %v1254
    %v1767 = vunpack.c.l.b16 %v1255
    %v1768 = vunpack.c.l.b16 %v1256
    %v1769 = vunpack.c.l.b16 %v1257
    %v1770 = vunpack.c.l.b16 %v1258
    %v1771 = vunpack.c.l.b16 %v1259
    %v1772 = vunpack.c.l.b16 %v1260
    %v1773 = vunpack.c.l.b16 %v1261
    %v1774 = vunpack.c.l.b16 %v1262
    %v1775 = vunpack.c.l.b16 %v1263
    %v1776 = vunpack.c.l.b16 %v1264
    %v1777 = vunpack.c.l.b16 %v1265
    %v1778 = vunpack.c.l.b16 %v1266
    %v1779 = vunpack.c.l.b16 %v1267
    %v1780 = vunpack.c.l.b16 %v1268
    %v1781 = vunpack.c.l.b16 %v1269
    %v1782 = vunpack.c.l.b16 %v1270
    %v1783 = vunpack.c.l.b16 %v1271
    %v1784 = vunpack.c.l.b16 %v1272
    %v1785 = vunpack.c.l.b16 %v1273
    %v1786 = vunpack.c.l.b16 %v1274
    %v1787 = vunpack.c.l.b16 %v1275
    %v1788 = vunpack.c.l.b16 %v1276
    %v1789 = vunpack.c.l.b16 %v1277
    %v1790 = vunpack.c.l.b16 %v1278
    %v1791 = vunpack.c.l.b16 %v1279
    %v1792 = vunpack.c.l.b16 %v1280
    %v1793 = vunpack.c.l.b16 %v1281
    %v1794 = vunpack.c.l.b16 %v1282
    %v1795 = vunpack.c.l.b16 %v1283
    %v1796 = vunpack.c.l.b16 %v1284
    %v1797 = vunpack.c.l.b16 %v1285
    %v1798 = vunpack.c.l.b16 %v1286
    %v1799 = vunpack.c.l.b16 %v1287
    %v1800 = vunpack.c.l.b16 %v1288
    %v1801 = vunpack.c.l.b16 %v1289
    %v1802 = vunpack.c.l.b16 %v1290
    %v1803 = vunpack.c.l.b16 %v1291
    %v1804 = vunpack.c.l.b16 %v1292
    %v1805 = vunpack.c.l.b16 %v1293
    %v1806 = vunpack.c.l.b16 %v1294
    %v1807 = vunpack.c.l.b16 %v1295
    %v1808 = vunpack.c.l.b16 %v1296
    %v1809 = vunpack.c.l.b16 %v1297
    %v1810 = vunpack.c.l.b16 %v1298
    %v1811 = vunpack.c.l.b16 %v1299
    %v1812 = vunpack.c.l.b16 %v1300
    %v1813 = vunpack.c.l.b16 %v1301
    %v1814 = vunpack.c.l.b16 %v1302
    %v1815 = vunpack.c.l.b16 %v1303
    %v1816 = vunpack.c.l.b16 %v1304
    %v1817 = vunpack.c.l.b16 %v1305
    %v1818 = vunpack.c.l.b16 %v1306
    %v1819 = vunpack.c.l.b16 %v1307
    %v1820 = vunpack.c.l.b16 %v1308
    %v1821 = vunpack.c.l.b16 %v1309
    %v1822 = vunpack.c.l.b16 %v1310
    %v1823 = vunpack.c.l.b16 %v1311
    %v1824 = vunpack.c.l.b16 %v1312
    %v1825 = vunpack.c.l.b16 %v1313
    %v1826 = vunpack.c.l.b16 %v1314
    %v1827 = vunpack.c.l.b16 %v1315
    %v1828 = vunpack.c.l.b16 %v1316
    %v1829 = vunpack.c.l.b16 %v1317
    %v1830 = vunpack.c.l.b16 %v1318
    %v1831 = vunpack.c.l.b16 %v1319
    %v1832 = vunpack.c.l.b16 %v1320
    %v1833 = vunpack.c.l.b16 %v1321
    %v1834 = vunpack.c.l.b16 %v1322
    %v1835 = vunpack.c.l.b16 %v1323
    %v1836 = vunpack.c.l.b16 %v1324
    %v1837 = vunpack.c.l.b16 %v1325
    %v1838 = vunpack.c.l.b16 %v1326
    %v1839 = vunpack.c.l.b16 %v1327
    %v1840 = vunpack.c.l.b16 %v1328
    %v1841 = vunpack.c.l.b16 %v1329
    %v1842 = vunpack.c.l.b16 %v1330
    %v1843 = vunpack.c.l.b16 %v1331
    %v1844 = vunpack.c.l.b16 %v1332
    %v1845 = vunpack.c.l.b16 %v1333
    %v1846 = vunpack.c.l.b16 %v1334
    %v1847 = vunpack.c.l.b16 %v1335
    %v1848 = vunpack.c.l.b16 %v1336
    %v1849 = vunpack.c.l.b16 %v1337
    %v1850 = vunpack.c.l.b16 %v1338
    %v1851 = vunpack.c.l.b16 %v1339
    %v1852 = vunpack.c.l.b16 %v1340
    %v1853 = vunpack.c.l.b16 %v1341
    %v1854 = vunpack.c.l.b16 %v1342
    %v1855 = vunpack.c.l.b16 %v1343
    %v1856 = vunpack.c.l.b16 %v1344
    %v1857 = vunpack.c.l.b16 %v1345
    %v1858 = vunpack.c.l.b16 %v1346
    %v1859 = vunpack.c.l.b16 %v1347
    %v1860 = vunpack.c.l.b16 %v1348
    %v1861 = vunpack.c.l.b16 %v1349
    %v1862 = vunpack.c.l.b16 %v1350
    %v1863 = vunpack.c.l.b16 %v1351
    %v1864 = vpack.c.b16 %v1609, %v1608
    %v1865 = vpack.c.b16 %v1611, %v1610
    %v1866 = vpack.c.b16 %v1613, %v1612
    %v1867 = vpack.c.b16 %v1615, %v1614
    %v1868 = vpack.c.b16 %v1617, %v1616
    %v1869 = vpack.c.b16 %v1619, %v1618
    %v1870 = vpack.c.b16 %v1621, %v1620
    %v1871 = vpack.c.b16 %v1623, %v1622
    %v1872 = vpack.c.b16 %v1625, %v1624
    %v1873 = vpack.c.b16 %v1627, %v1626
    %v1874 = vpack.c.b16 %v1629, %v1628
    %v1875 = vpack.c.b16 %v1631, %v1630
    %v1876 = vpack.c.b16 %v1633, %v1632
    %v1877 = vpack.c.b16 %v1635, %v1634
    %v1878 = vpack.c.b16 %v1637, %v1636
    %v1879 = vpack.c.b16 %v1639, %v1638
    %v1880 = vpack.c.b16 %v1641, %v1640
    %v1881 = vpack.c.b16 %v1643, %v1642
    %v1882 = vpack.c.b16 %v1645, %v1644
    %v1883 = vpack.c.b16 %v1647, %v1646
    %v1884 = vpack.c.b16 %v1649, %v1648
    %v1885 = vpack.c.b16 %v1651, %v1650
    %v1886 = vpack.c.b16 %v1653, %v1652
    %v1887 = vpack.c.b16 %v1655, %v1654
    %v1888 = vpack.c.b16 %v1657, %v1656
    %v1889 = vpack.c.b16 %v1659, %v1658
    %v1890 = vpack.c.b16 %v1661, %v1660
    %v1891 = vpack.c.b16 %v1663, %v1662
    %v1892 = vpack.c.b16 %v1665, %v1664
    %v1893 = vpack.c.b16 %v1667, %v1666
    %v1894 = vpack.c.b16 %v1669, %v1668
    %v1895 = vpack.c.b16 %v1671, %v1670
    %v1896 = vpack.c.b16 %v1673, %v1672
    %v1897 = vpack.c.b16 %v1675, %v1674
    %v1898 = vpack.c.b16 %v1677, %v1676
    %v1899 = vpack.c.b16 %v1679, %v1678
    %v1900 = vpack.c.b16 %v1681, %v1680
    %v1901 = vpack.c.b16 %v1683, %v1682
    %v1902 = vpack.c.b16 %v1685, %v1684
    %v1903 = vpack.c.b16 %v1687, %v1686
    %v1904 = vpack.c.b16 %v1689, %v1688
    %v1905 = vpack.c.b16 %v1691, %v1690
    %v1906 = vpack.c.b16 %v1693, %v1692
    %v1907 = vpack.c.b16 %v1695, %v1694
    %v1908 = vpack.c.b16 %v1697, %v1696
    %v1909 = vpack.c.b16 %v1699, %v1698
    %v1910 = vpack.c.b16 %v1701, %v1700
    %v1911 = vpack.c.b16 %v1703, %v1702
    %v1912 = vpack.c.b16 %v1705, %v1704
    %v1913 = vpack.c.b16 %v1707, %v1706
    %v1914 = vpack.c.b16 %v1709, %v1708
    %v1915 = vpack.c.b16 %v1711, %v1710
    %v1916 = vpack.c.b16 %v1713, %v1712
    %v1917 = vpack.c.b16 %v1715, %v1714
    %v1918 = vpack.c.b16 %v1717, %v1716
    %v1919 = vpack.c.b16 %v1719, %v1718
    %v1920 = vpack.c.b16 %v1721, %v1720
    %v1921 = vpack.c.b16 %v1723, %v1722
    %v1922 = vpack.c.b16 %v1725, %v1724
    %v1923 = vpack.c.b16 %v1727, %v1726
    %v1924 = vpack.c.b16 %v1729, %v1728
    %v1925 = vpack.c.b16 %v1731, %v1730
    %v1926 = vpack.c.b16 %v1733, %v1732
    %v1927 = vpack.c.b16 %v1735, %v1734
    %v1928 = vpack.c.b16 %v1737, %v1736
    %v1929 = vpack.c.b16 %v1739, %v1738
    %v1930 = vpack.c.b16 %v1741, %v1740
    %v1931 = vpack.c.b16 %v1743, %v1742
    %v1932 = vpack.c.b16 %v1745, %v1744
    %v1933 = vpack.c.b16 %v1747, %v1746
    %v1934 = vpack.c.b16 %v1749, %v1748
    %v1935 = vpack.c.b16 %v1751, %v1750
    %v1936 = vpack.c.b16 %v1753, %v1752
    %v1937 = vpack.c.b16 %v1755, %v1754
    %v1938 = vpack.c.b16 %v1757, %v1756
    %v1939 = vpack.c.b16 %v1759, %v1758
    %v1940 = vpack.c.b16 %v1761, %v1760
    %v1941 = vpack.c.b16 %v1763, %v1762
    %v1942 = vpack.c.b16 %v1765, %v1764
    %v1943 = vpack.c.b16 %v1767, %v1766
    %v1944 = vpack.c.b16 %v1769, %v1768
    %v1945 = vpack.c.b16 %v1771, %v1770
    %v1946 = vpack.c.b16 %v1773, %v1772
    %v1947 = vpack.c.b16 %v1775, %v1774
    %v1948 = vpack.c.b16 %v1777, %v1776
    %v1949 = vpack.c.b16 %v1779, %v1778
    %v1950 = vpack.c.b16 %v1781, %v1780
    %v1951 = vpack.c.b16 %v1783, %v1782
    %v1952 = vpack.c.b16 %v1785, %v1784
    %v1953 = vpack.c.b16 %v1787, %v1786
    %v1954 = vpack.c.b16 %v1789, %v1788
    %v1955 = vpack.c.b16 %v1791, %v1790
    %v1956 = vpack.c.b16 %v1793, %v1792
    %v1957 = vpack.c.b16 %v1795, %v1794
    %v1958 = vpack.c.b16 %v1797, %v1796
    %v1959 = vpack.c.b16 %v1799, %v1798
    %v1960 = vpack.c.b16 %v1801, %v1800
    %v1961 = vpack.c.b16 %v1803, %v1802
    %v1962 = vpack.c.b16 %v1805, %v1804
    %v1963 = vpack.c.b16 %v1807, %v1806
    %v1964 = vpack.c.b16 %v1809, %v1808
    %v1965 = vpack.c.b16 %v1811, %v1810
    %v1966 = vpack.c.b16 %v1813, %v1812
    %v1967 = vpack.c.b16 %v1815, %v1814
    %v1968 = vpack.c.b16 %v1817, %v1816
    %v1969 = vpack.c.b16 %v1819, %v1818
    %v1970 = vpack.c.b16 %v1821, %v1820
    %v1971 = vpack.c.b16 %v1823, %v1822
    %v1972 = vpack.c.b16 %v1825, %v1824
    %v1973 = vpack.c.b16 %v1827, %v1826
    %v1974 = vpack.c.b16 %v1829, %v1828
    %v1975 = vpack.c.b16 %v1831, %v1830
    %v1976 = vpack.c.b16 %v1833, %v1832
    %v1977 = vpack.c.b16 %v1835, %v1834
    %v1978 = vpack.c.b16 %v1837, %v1836
    %v1979 = vpack.c.b16 %v1839, %v1838
    %v1980 = vpack.c.b16 %v1841, %v1840
    %v1981 = vpack.c.b16 %v1843, %v1842
    %v1982 = vpack.c.b16 %v1845, %v1844
    %v1983 = vpack.c.b16 %v1847, %v1846
    %v1984 = vpack.c.b16 %v1849, %v1848
    %v1985 = vpack.c.b16 %v1851, %v1850
    %v1986 = vpack.c.b16 %v1853, %v1852
    %v1987 = vpack.c.b16 %v1855, %v1854
    %v1988 = vpack.c.b16 %v1857, %v1856
    %v1989 = vpack.c.b16 %v1859, %v1858
    %v1990 = vpack.c.b16 %v1861, %v1860
    %v1991 = vpack.c.b16 %v1863, %v1862
    %2120 = vmatpush.bf16.msra.mxu0 %v1871
    %2121 = vmatpush.bf16.msra.mxu0 %v1870
    %2122 = vmatpush.bf16.msra.mxu0 %v1869
    %2123 = vmatpush.bf16.msra.mxu0 %v1868
    %2124 = vmatpush.bf16.msra.mxu0 %v1867
    %2125 = vmatpush.bf16.msra.mxu0 %v1866
    %2126 = vmatpush.bf16.msra.mxu0 %v1865
    %2127 = vmatpush.bf16.msra.mxu0 %v1864
    %2128 = vmatmul.bf16.gmra.mxu0 %v1080
    %v2129 = vpop.f32.mrf.mxu0
    %v2130 = vadd.f32 %v53, %v2129
    %v2131 = vpop.f32.mrf.mxu0
    %v2132 = vadd.f32 %v54, %v2131
    %2133 = vdwg.mxu0
    %2134 = vmatpush.bf16.msra.mxu0 %v1879
    %2135 = vmatpush.bf16.msra.mxu0 %v1878
    %2136 = vmatpush.bf16.msra.mxu0 %v1877
    %2137 = vmatpush.bf16.msra.mxu0 %v1876
    %2138 = vmatpush.bf16.msra.mxu0 %v1875
    %2139 = vmatpush.bf16.msra.mxu0 %v1874
    %2140 = vmatpush.bf16.msra.mxu0 %v1873
    %2141 = vmatpush.bf16.msra.mxu0 %v1872
    %2142 = vmatmul.bf16.gmra.mxu0 %v1081
    %v2143 = vpop.f32.mrf.mxu0
    %v2144 = vadd.f32 %v2130, %v2143
    %v2145 = vpop.f32.mrf.mxu0
    %v2146 = vadd.f32 %v2132, %v2145
    %2147 = vdwg.mxu0
    %2148 = vmatpush.bf16.msra.mxu0 %v1887
    %2149 = vmatpush.bf16.msra.mxu0 %v1886
    %2150 = vmatpush.bf16.msra.mxu0 %v1885
    %2151 = vmatpush.bf16.msra.mxu0 %v1884
    %2152 = vmatpush.bf16.msra.mxu0 %v1883
    %2153 = vmatpush.bf16.msra.mxu0 %v1882
    %2154 = vmatpush.bf16.msra.mxu0 %v1881
    %2155 = vmatpush.bf16.msra.mxu0 %v1880
    %2156 = vmatmul.bf16.gmra.mxu0 %v1082
    %v2157 = vpop.f32.mrf.mxu0
    %v2158 = vadd.f32 %v2144, %v2157
    %v2159 = vpop.f32.mrf.mxu0
    %v2160 = vadd.f32 %v2146, %v2159
    %2161 = vdwg.mxu0
    %2162 = vmatpush.bf16.msra.mxu0 %v1895
    %2163 = vmatpush.bf16.msra.mxu0 %v1894
    %2164 = vmatpush.bf16.msra.mxu0 %v1893
    %2165 = vmatpush.bf16.msra.mxu0 %v1892
    %2166 = vmatpush.bf16.msra.mxu0 %v1891
    %2167 = vmatpush.bf16.msra.mxu0 %v1890
    %2168 = vmatpush.bf16.msra.mxu0 %v1889
    %2169 = vmatpush.bf16.msra.mxu0 %v1888
    %2170 = vmatmul.bf16.gmra.mxu0 %v1083
    %v2171 = vpop.f32.mrf.mxu0
    %v2172 = vadd.f32 %v2158, %v2171
    %v2173 = vpop.f32.mrf.mxu0
    %v2174 = vadd.f32 %v2160, %v2173
    %2175 = vdwg.mxu0
    %2176 = vmatpush.bf16.msra.mxu0 %v1903
    %2177 = vmatpush.bf16.msra.mxu0 %v1902
    %2178 = vmatpush.bf16.msra.mxu0 %v1901
    %2179 = vmatpush.bf16.msra.mxu0 %v1900
    %2180 = vmatpush.bf16.msra.mxu0 %v1899
    %2181 = vmatpush.bf16.msra.mxu0 %v1898
    %2182 = vmatpush.bf16.msra.mxu0 %v1897
    %2183 = vmatpush.bf16.msra.mxu0 %v1896
    %2184 = vmatmul.bf16.gmra.mxu0 %v1084
    %v2185 = vpop.f32.mrf.mxu0
    %v2186 = vadd.f32 %v2172, %v2185
    %v2187 = vpop.f32.mrf.mxu0
    %v2188 = vadd.f32 %v2174, %v2187
    %2189 = vdwg.mxu0
    %2190 = vmatpush.bf16.msra.mxu0 %v1911
    %2191 = vmatpush.bf16.msra.mxu0 %v1910
    %2192 = vmatpush.bf16.msra.mxu0 %v1909
    %2193 = vmatpush.bf16.msra.mxu0 %v1908
    %2194 = vmatpush.bf16.msra.mxu0 %v1907
    %2195 = vmatpush.bf16.msra.mxu0 %v1906
    %2196 = vmatpush.bf16.msra.mxu0 %v1905
    %2197 = vmatpush.bf16.msra.mxu0 %v1904
    %2198 = vmatmul.bf16.gmra.mxu0 %v1085
    %v2199 = vpop.f32.mrf.mxu0
    %v2200 = vadd.f32 %v2186, %v2199
    %v2201 = vpop.f32.mrf.mxu0
    %v2202 = vadd.f32 %v2188, %v2201
    %2203 = vdwg.mxu0
    %2204 = vmatpush.bf16.msra.mxu0 %v1919
    %2205 = vmatpush.bf16.msra.mxu0 %v1918
    %2206 = vmatpush.bf16.msra.mxu0 %v1917
    %2207 = vmatpush.bf16.msra.mxu0 %v1916
    %2208 = vmatpush.bf16.msra.mxu0 %v1915
    %2209 = vmatpush.bf16.msra.mxu0 %v1914
    %2210 = vmatpush.bf16.msra.mxu0 %v1913
    %2211 = vmatpush.bf16.msra.mxu0 %v1912
    %2212 = vmatmul.bf16.gmra.mxu0 %v1086
    %v2213 = vpop.f32.mrf.mxu0
    %v2214 = vadd.f32 %v2200, %v2213
    %v2215 = vpop.f32.mrf.mxu0
    %v2216 = vadd.f32 %v2202, %v2215
    %2217 = vdwg.mxu0
    %2218 = vmatpush.bf16.msra.mxu0 %v1927
    %2219 = vmatpush.bf16.msra.mxu0 %v1926
    %2220 = vmatpush.bf16.msra.mxu0 %v1925
    %2221 = vmatpush.bf16.msra.mxu0 %v1924
    %2222 = vmatpush.bf16.msra.mxu0 %v1923
    %2223 = vmatpush.bf16.msra.mxu0 %v1922
    %2224 = vmatpush.bf16.msra.mxu0 %v1921
    %2225 = vmatpush.bf16.msra.mxu0 %v1920
    %2226 = vmatmul.bf16.gmra.mxu0 %v1087
    %v2227 = vpop.f32.mrf.mxu0
    %v2228 = vadd.f32 %v2214, %v2227
    %v2229 = vpop.f32.mrf.mxu0
    %v2230 = vadd.f32 %v2216, %v2229
    %2231 = vdwg.mxu0
    %2232 = vmatpush.bf16.msra.mxu0 %v1935
    %2233 = vmatpush.bf16.msra.mxu0 %v1934
    %2234 = vmatpush.bf16.msra.mxu0 %v1933
    %2235 = vmatpush.bf16.msra.mxu0 %v1932
    %2236 = vmatpush.bf16.msra.mxu0 %v1931
    %2237 = vmatpush.bf16.msra.mxu0 %v1930
    %2238 = vmatpush.bf16.msra.mxu0 %v1929
    %2239 = vmatpush.bf16.msra.mxu0 %v1928
    %2240 = vmatmul.bf16.gmra.mxu0 %v1088
    %v2241 = vpop.f32.mrf.mxu0
    %v2242 = vadd.f32 %v2228, %v2241
    %v2243 = vpop.f32.mrf.mxu0
    %v2244 = vadd.f32 %v2230, %v2243
    %2245 = vdwg.mxu0
    %2246 = vmatpush.bf16.msra.mxu0 %v1943
    %2247 = vmatpush.bf16.msra.mxu0 %v1942
    %2248 = vmatpush.bf16.msra.mxu0 %v1941
    %2249 = vmatpush.bf16.msra.mxu0 %v1940
    %2250 = vmatpush.bf16.msra.mxu0 %v1939
    %2251 = vmatpush.bf16.msra.mxu0 %v1938
    %2252 = vmatpush.bf16.msra.mxu0 %v1937
    %2253 = vmatpush.bf16.msra.mxu0 %v1936
    %2254 = vmatmul.bf16.gmra.mxu0 %v1089
    %v2255 = vpop.f32.mrf.mxu0
    %v2256 = vadd.f32 %v2242, %v2255
    %v2257 = vpop.f32.mrf.mxu0
    %v2258 = vadd.f32 %v2244, %v2257
    %2259 = vdwg.mxu0
    %2260 = vmatpush.bf16.msra.mxu0 %v1951
    %2261 = vmatpush.bf16.msra.mxu0 %v1950
    %2262 = vmatpush.bf16.msra.mxu0 %v1949
    %2263 = vmatpush.bf16.msra.mxu0 %v1948
    %2264 = vmatpush.bf16.msra.mxu0 %v1947
    %2265 = vmatpush.bf16.msra.mxu0 %v1946
    %2266 = vmatpush.bf16.msra.mxu0 %v1945
    %2267 = vmatpush.bf16.msra.mxu0 %v1944
    %2268 = vmatmul.bf16.gmra.mxu0 %v1090
    %v2269 = vpop.f32.mrf.mxu0
    %v2270 = vadd.f32 %v2256, %v2269
    %v2271 = vpop.f32.mrf.mxu0
    %v2272 = vadd.f32 %v2258, %v2271
    %2273 = vdwg.mxu0
    %2274 = vmatpush.bf16.msra.mxu0 %v1959
    %2275 = vmatpush.bf16.msra.mxu0 %v1958
    %2276 = vmatpush.bf16.msra.mxu0 %v1957
    %2277 = vmatpush.bf16.msra.mxu0 %v1956
    %2278 = vmatpush.bf16.msra.mxu0 %v1955
    %2279 = vmatpush.bf16.msra.mxu0 %v1954
    %2280 = vmatpush.bf16.msra.mxu0 %v1953
    %2281 = vmatpush.bf16.msra.mxu0 %v1952
    %2282 = vmatmul.bf16.gmra.mxu0 %v1091
    %v2283 = vpop.f32.mrf.mxu0
    %v2284 = vadd.f32 %v2270, %v2283
    %v2285 = vpop.f32.mrf.mxu0
    %v2286 = vadd.f32 %v2272, %v2285
    %2287 = vdwg.mxu0
    %2288 = vmatpush.bf16.msra.mxu0 %v1967
    %2289 = vmatpush.bf16.msra.mxu0 %v1966
    %2290 = vmatpush.bf16.msra.mxu0 %v1965
    %2291 = vmatpush.bf16.msra.mxu0 %v1964
    %2292 = vmatpush.bf16.msra.mxu0 %v1963
    %2293 = vmatpush.bf16.msra.mxu0 %v1962
    %2294 = vmatpush.bf16.msra.mxu0 %v1961
    %2295 = vmatpush.bf16.msra.mxu0 %v1960
    %2296 = vmatmul.bf16.gmra.mxu0 %v1092
    %v2297 = vpop.f32.mrf.mxu0
    %v2298 = vadd.f32 %v2284, %v2297
    %v2299 = vpop.f32.mrf.mxu0
    %v2300 = vadd.f32 %v2286, %v2299
    %2301 = vdwg.mxu0
    %2302 = vmatpush.bf16.msra.mxu0 %v1975
    %2303 = vmatpush.bf16.msra.mxu0 %v1974
    %2304 = vmatpush.bf16.msra.mxu0 %v1973
    %2305 = vmatpush.bf16.msra.mxu0 %v1972
    %2306 = vmatpush.bf16.msra.mxu0 %v1971
    %2307 = vmatpush.bf16.msra.mxu0 %v1970
    %2308 = vmatpush.bf16.msra.mxu0 %v1969
    %2309 = vmatpush.bf16.msra.mxu0 %v1968
    %2310 = vmatmul.bf16.gmra.mxu0 %v1093
    %v2311 = vpop.f32.mrf.mxu0
    %v2312 = vadd.f32 %v2298, %v2311
    %v2313 = vpop.f32.mrf.mxu0
    %v2314 = vadd.f32 %v2300, %v2313
    %2315 = vdwg.mxu0
    %2316 = vmatpush.bf16.msra.mxu0 %v1983
    %2317 = vmatpush.bf16.msra.mxu0 %v1982
    %2318 = vmatpush.bf16.msra.mxu0 %v1981
    %2319 = vmatpush.bf16.msra.mxu0 %v1980
    %2320 = vmatpush.bf16.msra.mxu0 %v1979
    %2321 = vmatpush.bf16.msra.mxu0 %v1978
    %2322 = vmatpush.bf16.msra.mxu0 %v1977
    %2323 = vmatpush.bf16.msra.mxu0 %v1976
    %2324 = vmatmul.bf16.gmra.mxu0 %v1094
    %v2325 = vpop.f32.mrf.mxu0
    %v2326 = vadd.f32 %v2312, %v2325
    %v2327 = vpop.f32.mrf.mxu0
    %v2328 = vadd.f32 %v2314, %v2327
    %2329 = vdwg.mxu0
    %2330 = vmatpush.bf16.msra.mxu0 %v1991
    %2331 = vmatpush.bf16.msra.mxu0 %v1990
    %2332 = vmatpush.bf16.msra.mxu0 %v1989
    %2333 = vmatpush.bf16.msra.mxu0 %v1988
    %2334 = vmatpush.bf16.msra.mxu0 %v1987
    %2335 = vmatpush.bf16.msra.mxu0 %v1986
    %2336 = vmatpush.bf16.msra.mxu0 %v1985
    %2337 = vmatpush.bf16.msra.mxu0 %v1984
    %2338 = vmatmul.bf16.gmra.mxu0 %v1095
    %v2339 = vpop.f32.mrf.mxu0
    %v2340 = vadd.f32 %v2326, %v2339
    %v2341 = vpop.f32.mrf.mxu0
    %v2342 = vadd.f32 %v2328, %v2341
    %2343 = vdwg.mxu0
    %2344 = vadd.xlane.f32.xlu0 %v2340
    %v2345 = vpop.xlane.xlu0 %2344
    %2346 = vadd.xlane.f32.xlu0 %v2342
    %v2347 = vpop.xlane.xlu0 %2346
    %v2348 = vrcp.pop 128.0
    %v2349 = vmul.f32 128.0, %v2348
    %v2350 = vsub.f32 1.0, %v2349
    %v2351 = vmul.f32 %v2348, %v2350
    %v2352 = vadd.f32 %v2348, %v2351
    %vm2353 = vweird.f32 %v2348
    %v2354 = vsel %vm2353, %v2348, %v2352
    %v2355 = vmul.f32 %v2345, %v2354
    %v2356 = vmul.f32 %v2347, %v2354
    %v2357 = vsub.f32 %v2340, %v2355
    %v2358 = vsub.f32 %v2342, %v2356
    %v2359 = vmul.f32 %v2357, %v2357
    %v2360 = vmul.f32 %v2358, %v2358
    %2361 = vadd.xlane.f32.xlu0 %v2359
    %v2362 = vpop.xlane.xlu0 %2361
    %2363 = vadd.xlane.f32.xlu0 %v2360
    %v2364 = vpop.xlane.xlu0 %2363
    %v2365 = vmul.f32 %v2362, %v2354
    %v2366 = vmul.f32 %v2364, %v2354
    %v2367 = vadd.f32 %v2365, 1e-05
    %v2368 = vadd.f32 %v2366, 1e-05
    %v2369 = vrsqrt.pop %v2367
    %v2370 = vmul.f32 %v2369, %v2367
    %v2371 = vmul.f32 %v2370, %v2369
    %v2372 = vmul.f32 0.5, %v2371
    %v2373 = vsub.f32 1.5, %v2372
    %v2374 = vmul.f32 %v2369, %v2373
    %vm2375 = vweird.f32 %v2367
    %vm2376 = vweird.f32 %v2369
    %vm2377 = vmor %vm2375, %vm2376
    %v2378 = vsel %vm2377, %v2369, %v2374
    %v2379 = vrsqrt.pop %v2368
    %v2380 = vmul.f32 %v2379, %v2368
    %v2381 = vmul.f32 %v2380, %v2379
    %v2382 = vmul.f32 0.5, %v2381
    %v2383 = vsub.f32 1.5, %v2382
    %v2384 = vmul.f32 %v2379, %v2383
    %vm2385 = vweird.f32 %v2368
    %vm2386 = vweird.f32 %v2379
    %vm2387 = vmor %vm2385, %vm2386
    %v2388 = vsel %vm2387, %v2379, %v2384
    %v2389 = vmul.f32 %v2357, %v2378
    %v2390 = vmul.f32 %v2358, %v2388
    %v2391 = vld [vmem:[%s3] sm:$0x1]
    %v2393 = vperm.slane %v2391, 0
    %v2395 = vmul.f32 %v2389, %v2393
    %v2396 = vmul.f32 %v2390, %v2393
    %v2397 = vld [vmem:[%s4] sm:$0x1]
    %v2399 = vperm.slane %v2397, 0
    %v2401 = vadd.f32 %v2395, %v2399
    %v2402 = vadd.f32 %v2396, %v2399
    %2403 = vst [vmem:[#allocation7] sm:$0xff] %v2401
    %2404 = vst [vmem:[#allocation7 + $0x8] sm:$0xff] %v2402
    // Predicated region
    $region30: #{decoder_layer.3} parent=1 // pred_check
      _
    $region31: #{decoder_layer.3} parent=1 // pred_check_branch
      %2406 = sbr.rel (0) target = $region33
    $region32: #{decoder_layer.3} parent=1 // pred_region
      %2408 = vsyncadd [#allocation4], 0
      %s2409 = sshll.u32 [#allocation7], 4
      %s2410 = int_to_ptr.vmem [resolvable:$true] %s2409
      %s2411 = sshll.u32 %s5, 4
      %s2412 = int_to_ptr.hbm [resolvable:$true] %s2411
      %2417 = dma.vmem_to_hbm [thread:$0]  %s2410, 256, %s2412, [#allocation4], 128, 128, 8
    $region33: #{decoder_layer.3} parent=1 // pred_fallthru
      _
    // Predicated region
    $region34: #{decoder_layer.3} parent=1 // pred_check
      _
    $region35: #{decoder_layer.3} parent=1 // pred_check_branch
      %2419 = sbr.rel (0) target = $region37
    $region36: #{decoder_layer.3} parent=1 // pred_region
      %2421 = dma.done [#allocation4], 256
    $region37: #{decoder_layer.3} parent=1 // pred_fallthru
      _
    %2422 = vsyncpa [#allocation3], 1
    %2423 = vsyncpa [#allocation6], 1
    %2424 = vsyncpa [#allocation4], 1

</llo_original>
